<compile_context>
chip_gen: v6e
topology: v6e:2x2x1
jax: 0.10.0
libtpu: 0.0.40
codegen_flags: <defaults>
</compile_context>

<pallas_src>
import functools

import jax
import jax.numpy as jnp
from jax.experimental import pallas as pl
from jax.experimental.pallas import tpu as pltpu


# ----------------------------------------------------------------------------
# Fused transformer-block kernel (whole batch in one invocation).
# ----------------------------------------------------------------------------
def _make_block_kernel(SB: int, B: int, D: int, nh: int, hd: int,
                       eps: float = 1e-5):
    def _layernorm(z, g, b):
        # Single-pass stats: var = E[z^2] - mean^2 ; rsqrt goes to the EUP slot.
        mu = jnp.mean(z, axis=-1, keepdims=True)
        ex2 = jnp.mean(z * z, axis=-1, keepdims=True)
        var = ex2 - mu * mu
        return (z - mu) * jax.lax.rsqrt(var + eps) * g + b

    def kernel(x_ref, vecs_ref, wqkv_ref, bqkv_ref, wo_ref, w1_ref, b1_ref,
               w2_ref, o_ref):
        # x_ref: (SB, D) f32        vecs_ref: (8, D) f32 packed small vectors
        # wqkv_ref: (D, 3D) bf16    bqkv_ref: (1, 3D) f32
        # wo_ref: (D, D) bf16       w1_ref: (D, 4D) bf16   b1_ref: (1, 4D) f32
        # w2_ref: (4D, D) bf16      o_ref: (SB, D) f32
        x = x_ref[...]

        ln1_g = vecs_ref[0:1, :]
        ln1_b = vecs_ref[1:2, :]
        bo = vecs_ref[2:3, :]
        ln2_g = vecs_ref[3:4, :]
        ln2_b = vecs_ref[4:5, :]
        b2 = vecs_ref[5:6, :]

        # ---- pre-LN (f32), then one bf16 cast feeds every QKV matmul ----
        h = _layernorm(x, ln1_g, ln1_b)
        h_bf = h.astype(jnp.bfloat16)

        # Cross-sample mask bias: row r of the flattened (S*B, D) slab belongs
        # to sample r % B; attention must not mix samples.  Computed once from
        # iotas (a handful of VPU ops) instead of per-sample slicing/loops.
        rid = jax.lax.broadcasted_iota(jnp.int32, (SB, SB), 0)
        cid = jax.lax.broadcasted_iota(jnp.int32, (SB, SB), 1)
        neg_bias = jnp.where((rid % B) == (cid % B), 0.0, -1e30)

        # ---- multi-head attention; heads unrolled (nh tiny & static) ----
        attn_acc = None
        for hh in range(nh):
            lo = hh * hd
            # Static *ref* slices of the weights (free views) -- avoids lane
            # slicing a live in-register qkv value at 16-aligned offsets.
            qh = jnp.dot(h_bf, wqkv_ref[:, lo:lo + hd],
                         preferred_element_type=jnp.float32) \
                + bqkv_ref[0:1, lo:lo + hd]                       # q pre-scaled
            kh = jnp.dot(h_bf, wqkv_ref[:, D + lo:D + lo + hd],
                         preferred_element_type=jnp.float32) \
                + bqkv_ref[0:1, D + lo:D + lo + hd]
            vh = jnp.dot(h_bf, wqkv_ref[:, 2 * D + lo:2 * D + lo + hd],
                         preferred_element_type=jnp.float32) \
                + bqkv_ref[0:1, 2 * D + lo:2 * D + lo + hd]

            # scores = qh @ kh.T without an explicit transpose (MXU handles it)
            s = jax.lax.dot_general(
                qh.astype(jnp.bfloat16), kh.astype(jnp.bfloat16),
                (((1,), (1,)), ((), ())),
                preferred_element_type=jnp.float32)               # (SB, SB)
            s = s + neg_bias
            s = s - jnp.max(s, axis=-1, keepdims=True)
            e = jnp.exp(s)
            p = e * pl.reciprocal(jnp.sum(e, axis=-1, keepdims=True),
                                  approx=True)

            ctx = jnp.dot(p.astype(jnp.bfloat16), vh.astype(jnp.bfloat16),
                          preferred_element_type=jnp.float32)     # (SB, hd)
            # Fold the head-concat into the output projection: accumulate
            # ctx @ Wo[lo:lo+hd, :] instead of materializing a concat.
            contrib = jnp.dot(ctx.astype(jnp.bfloat16), wo_ref[lo:lo + hd, :],
                              preferred_element_type=jnp.float32) # (SB, D)
            attn_acc = contrib if attn_acc is None else attn_acc + contrib

        res1 = x + attn_acc + bo                                  # residual #1

        # ---- MLP: LayerNorm -> Linear(4D) -> ReLU -> Linear(D) ----
        h2 = _layernorm(res1, ln2_g, ln2_b)
        m = jnp.dot(h2.astype(jnp.bfloat16), w1_ref[...],
                    preferred_element_type=jnp.float32) + b1_ref[...]
        m = jnp.maximum(m, 0.0)
        m = jnp.dot(m.astype(jnp.bfloat16), w2_ref[...],
                    preferred_element_type=jnp.float32) + b2

        o_ref[...] = (res1 + m).astype(o_ref.dtype)               # residual #2

    return kernel


# ----------------------------------------------------------------------------
# Forward wrapper: ONE pallas_call, one grid step, no transposes.
# ----------------------------------------------------------------------------
@functools.partial(jax.jit, static_argnames=("nh",))
def transformer_block_forward(x_sbd, prep, nh):
    """x_sbd: (S, B, D) seq-first (nn.MultiheadAttention default layout)."""
    S, B, D = x_sbd.shape
    hd = D // nh
    SB = S * B

    # Contiguous reshape (free; no transpose / extra HBM round trip):
    # row s*B + b of the 2-D slab is (seq position s, sample b).
    x2d = x_sbd.reshape(SB, D)

    out2d = pl.pallas_call(
        _make_block_kernel(SB, B, D, nh, hd),
        out_shape=jax.ShapeDtypeStruct((SB, D), jnp.float32),
        grid=(1,),  # single invocation: whole batch in one step, all VMEM-resident
        in_specs=[
            pl.BlockSpec((SB, D), lambda i: (0, 0)),         # x slab
            pl.BlockSpec((8, D), lambda i: (0, 0)),          # packed vectors
            pl.BlockSpec((D, 3 * D), lambda i: (0, 0)),      # fused QKV weight (bf16)
            pl.BlockSpec((1, 3 * D), lambda i: (0, 0)),      # fused QKV bias
            pl.BlockSpec((D, D), lambda i: (0, 0)),          # out_proj weight^T (bf16)
            pl.BlockSpec((D, 4 * D), lambda i: (0, 0)),      # mlp W1^T (bf16)
            pl.BlockSpec((1, 4 * D), lambda i: (0, 0)),      # mlp b1
            pl.BlockSpec((4 * D, D), lambda i: (0, 0)),      # mlp W2^T (bf16)
        ],
        out_specs=pl.BlockSpec((SB, D), lambda i: (0, 0)),
        # No dimension_semantics: at this size a v7x 2-TC split would only add
        # fixed per-core setup cost; re-introduce a batch grid axis when B >= 8.
    )(x2d, prep["vecs"], prep["wqkv"], prep["bqkv"], prep["wo"],
      prep["w1"], prep["b1"], prep["w2"])

    return out2d.reshape(S, B, D)  # contiguous reshape back (free)


# ----------------------------------------------------------------------------
# Parameters (PyTorch layouts) + one-time prep (hoisted out of the forward).
# ----------------------------------------------------------------------------
def init_params(key, D, nh):
    ks = jax.random.split(key, 18)

    def _w(k, shape, scale=0.08):
        return scale * jax.random.normal(k, shape, dtype=jnp.float32)

    p = {}
    p["ln1_g"] = 1.0 + _w(ks[0], (D,), 0.05)
    p["ln1_b"] = _w(ks[1], (D,), 0.05)
    p["wq"], p["bq"] = _w(ks[2], (D, D)), _w(ks[3], (D,), 0.02)   # nn.Linear (out,in)
    p["wk"], p["bk"] = _w(ks[4], (D, D)), _w(ks[5], (D,), 0.02)
    p["wv"], p["bv"] = _w(ks[6], (D, D)), _w(ks[7], (D,), 0.02)
    p["in_proj_w"] = _w(ks[8], (3 * D, D))                        # MHA in_proj
    p["in_proj_b"] = _w(ks[9], (3 * D,), 0.02)
    p["wo"], p["bo"] = _w(ks[10], (D, D)), _w(ks[11], (D,), 0.02) # MHA out_proj
    p["ln2_g"] = 1.0 + _w(ks[12], (D,), 0.05)
    p["ln2_b"] = _w(ks[13], (D,), 0.05)
    p["w1"], p["b1"] = _w(ks[14], (4 * D, D)), _w(ks[15], (4 * D,), 0.02)
    p["w2"], p["b2"] = _w(ks[16], (D, 4 * D)), _w(ks[17], (D,), 0.02)
    return p


def prepare_params(p, D, nh):
    """One-time weight prep (exact algebraic folding; not on the jit hot path)."""
    hd = D // nh
    scale = hd ** -0.5
    wiq, wik, wiv = jnp.split(p["in_proj_w"], 3, axis=0)
    biq, bik, biv = jnp.split(p["in_proj_b"], 3)

    # linearQ/K/V followed by MHA in_proj == one linear map; fold them.
    # Also fold the 1/sqrt(head_dim) attention scale into the query branch.
    wq_eff = (wiq @ p["wq"]).T * scale
    bq_eff = (wiq @ p["bq"] + biq) * scale
    wk_eff = (wik @ p["wk"]).T
    bk_eff = wik @ p["bk"] + bik
    wv_eff = (wiv @ p["wv"]).T
    bv_eff = wiv @ p["bv"] + biv

    wqkv = jnp.concatenate([wq_eff, wk_eff, wv_eff], axis=1)          # (D, 3D)
    bqkv = jnp.concatenate([bq_eff, bk_eff, bv_eff]).reshape(1, 3 * D)

    vecs = jnp.zeros((8, D), jnp.float32)                             # one tile
    for i, v in enumerate([p["ln1_g"], p["ln1_b"], p["bo"],
                           p["ln2_g"], p["ln2_b"], p["b2"]]):
        vecs = vecs.at[i].set(v)

    # Matmul weights stored bf16 (MXU-native rate, half the DMA/VMEM bytes);
    # biases and LN/residual vectors stay f32 (elementwise math stays f32).
    return {
        "vecs": vecs,
        "wqkv": wqkv.astype(jnp.bfloat16),                 # (D, 3D)
        "bqkv": bqkv,                                      # (1, 3D) f32
        "wo": jnp.transpose(p["wo"]).astype(jnp.bfloat16), # (D, D)
        "w1": jnp.transpose(p["w1"]).astype(jnp.bfloat16), # (D, 4D)
        "b1": p["b1"].reshape(1, 4 * D),                   # (1, 4D) f32
        "w2": jnp.transpose(p["w2"]).astype(jnp.bfloat16), # (4D, D)
    }


# ----------------------------------------------------------------------------
# Pure-JAX reference (unfused, unfolded, f32) for correctness checking.
# ----------------------------------------------------------------------------
def reference_forward(x, p, nh):
    S, B, D = x.shape
    hd = D // nh

    def ln(z, g, b, eps=1e-5):
        mu = jnp.mean(z, axis=-1, keepdims=True)
        var = jnp.mean((z - mu) ** 2, axis=-1, keepdims=True)
        return (z - mu) / jnp.sqrt(var + eps) * g + b

    o = ln(x, p["ln1_g"], p["ln1_b"])
    q = o @ p["wq"].T + p["bq"]
    k = o @ p["wk"].T + p["bk"]
    v = o @ p["wv"].T + p["bv"]

    wiq, wik, wiv = jnp.split(p["in_proj_w"], 3, axis=0)
    biq, bik, biv = jnp.split(p["in_proj_b"], 3)
    q = (q @ wiq.T + biq).reshape(S, B, nh, hd)
    k = (k @ wik.T + bik).reshape(S, B, nh, hd)
    v = (v @ wiv.T + biv).reshape(S, B, nh, hd)

    scores = jnp.einsum("sbhd,tbhd->bhst", q, k) * (hd ** -0.5)
    attn = jax.nn.softmax(scores, axis=-1)
    ctx = jnp.einsum("bhst,tbhd->sbhd", attn, v).reshape(S, B, D)
    attn_out = ctx @ p["wo"].T + p["bo"]

    res1 = x + attn_out
    h = ln(res1, p["ln2_g"], p["ln2_b"])
    m = jnp.maximum(h @ p["w1"].T + p["b1"], 0.0) @ p["w2"].T + p["b2"]
    return res1 + m


if __name__ == "__main__":
    # Small config: dimofmodel=32, numofheads=2, seq=8, batch=2 (seq-first layout).
    S, B, D, NH = 8, 2, 32, 2
    key = jax.random.PRNGKey(0)
    kx, kp = jax.random.split(key)

    x = jax.random.normal(kx, (S, B, D), dtype=jnp.float32)
    params = init_params(kp, D, NH)
    prep = prepare_params(params, D, NH)

    out = transformer_block_forward(x, prep, NH)
    jax.block_until_ready(out)
    assert out.shape == (S, B, D), out.shape

    ref = reference_forward(x, params, NH)
    max_err = float(jnp.max(jnp.abs(out - ref)))
    # Tolerance loosened vs the all-f32 version: bf16 matmul operands + approx
    # EUP reciprocal in the softmax (review item 4 / correctness note).
    assert jnp.allclose(out, ref, atol=3e-2, rtol=3e-2), max_err

    print("KERNEL_OK")
</pallas_src>

<mosaic_0001>
module attributes {stable_mosaic.version = 11 : i64} {
  func.func @kernel(%arg0: i32, %arg1: memref<16x32xf32, #tpu.memory_space<vmem>>, %arg2: memref<8x32xf32, #tpu.memory_space<vmem>>, %arg3: memref<32x96xbf16, #tpu.memory_space<vmem>>, %arg4: memref<1x96xf32, #tpu.memory_space<vmem>>, %arg5: memref<32x32xbf16, #tpu.memory_space<vmem>>, %arg6: memref<32x128xbf16, #tpu.memory_space<vmem>>, %arg7: memref<1x128xf32, #tpu.memory_space<vmem>>, %arg8: memref<128x32xbf16, #tpu.memory_space<vmem>>, %arg9: memref<16x32xf32, #tpu.memory_space<vmem>>) attributes {dimension_semantics = [#tpu.dimension_semantics<arbitrary>], iteration_bounds = array<i64: 1>, scalar_prefetch = 0 : i64, scratch_operands = 0 : i64, tpu.core_type = #tpu.core_type<tc>, window_params = [{pipeline_mode = #tpu.pipeline_mode<synchronous>, transform_indices = @transform_0, window_bounds = array<i64: 16, 32>}, {pipeline_mode = #tpu.pipeline_mode<synchronous>, transform_indices = @transform_1, window_bounds = array<i64: 8, 32>}, {pipeline_mode = #tpu.pipeline_mode<synchronous>, transform_indices = @transform_2, window_bounds = array<i64: 32, 96>}, {pipeline_mode = #tpu.pipeline_mode<synchronous>, transform_indices = @transform_3, window_bounds = array<i64: 1, 96>}, {pipeline_mode = #tpu.pipeline_mode<synchronous>, transform_indices = @transform_4, window_bounds = array<i64: 32, 32>}, {pipeline_mode = #tpu.pipeline_mode<synchronous>, transform_indices = @transform_5, window_bounds = array<i64: 32, 128>}, {pipeline_mode = #tpu.pipeline_mode<synchronous>, transform_indices = @transform_6, window_bounds = array<i64: 1, 128>}, {pipeline_mode = #tpu.pipeline_mode<synchronous>, transform_indices = @transform_7, window_bounds = array<i64: 128, 32>}, {pipeline_mode = #tpu.pipeline_mode<synchronous>, transform_indices = @transform_8, window_bounds = array<i64: 16, 32>}]} {
    %c0 = arith.constant 0 : index
    %c0_0 = arith.constant 0 : index
    %0 = vector.load %arg1[%c0, %c0_0] : memref<16x32xf32, #tpu.memory_space<vmem>>, vector<16x32xf32>
    %c0_1 = arith.constant 0 : index
    %c0_2 = arith.constant 0 : index
    %1 = vector.load %arg2[%c0_1, %c0_2] : memref<8x32xf32, #tpu.memory_space<vmem>>, vector<1x32xf32>
    %c1 = arith.constant 1 : index
    %c0_3 = arith.constant 0 : index
    %2 = vector.load %arg2[%c1, %c0_3] : memref<8x32xf32, #tpu.memory_space<vmem>>, vector<1x32xf32>
    %c2 = arith.constant 2 : index
    %c0_4 = arith.constant 0 : index
    %3 = vector.load %arg2[%c2, %c0_4] : memref<8x32xf32, #tpu.memory_space<vmem>>, vector<1x32xf32>
    %c3 = arith.constant 3 : index
    %c0_5 = arith.constant 0 : index
    %4 = vector.load %arg2[%c3, %c0_5] : memref<8x32xf32, #tpu.memory_space<vmem>>, vector<1x32xf32>
    %c4 = arith.constant 4 : index
    %c0_6 = arith.constant 0 : index
    %5 = vector.load %arg2[%c4, %c0_6] : memref<8x32xf32, #tpu.memory_space<vmem>>, vector<1x32xf32>
    %c5 = arith.constant 5 : index
    %c0_7 = arith.constant 0 : index
    %6 = vector.load %arg2[%c5, %c0_7] : memref<8x32xf32, #tpu.memory_space<vmem>>, vector<1x32xf32>
    %cst = arith.constant dense<0.000000e+00> : vector<16xf32>
    %7 = vector.multi_reduction <add>, %0, %cst [1] : vector<16x32xf32> to vector<16xf32>
    %8 = vector.shape_cast %7 : vector<16xf32> to vector<16x1xf32>
    %cst_8 = arith.constant 3.200000e+01 : f32
    %9 = vector.broadcast %cst_8 : f32 to vector<16x1xf32>
    %10 = arith.divf %8, %9 : vector<16x1xf32>
    %11 = arith.mulf %0, %0 : vector<16x32xf32>
    %cst_9 = arith.constant dense<0.000000e+00> : vector<16xf32>
    %12 = vector.multi_reduction <add>, %11, %cst_9 [1] : vector<16x32xf32> to vector<16xf32>
    %13 = vector.shape_cast %12 : vector<16xf32> to vector<16x1xf32>
    %cst_10 = arith.constant 3.200000e+01 : f32
    %14 = vector.broadcast %cst_10 : f32 to vector<16x1xf32>
    %15 = arith.divf %13, %14 : vector<16x1xf32>
    %16 = arith.mulf %10, %10 : vector<16x1xf32>
    %17 = arith.subf %15, %16 : vector<16x1xf32>
    %18 = vector.broadcast %10 : vector<16x1xf32> to vector<16x32xf32>
    %19 = arith.subf %0, %18 : vector<16x32xf32>
    %cst_11 = arith.constant 9.99999974E-6 : f32
    %20 = vector.broadcast %cst_11 : f32 to vector<16x1xf32>
    %21 = arith.addf %17, %20 : vector<16x1xf32>
    %22 = math.rsqrt %21 : vector<16x1xf32>
    %23 = vector.broadcast %22 : vector<16x1xf32> to vector<16x32xf32>
    %24 = arith.mulf %19, %23 : vector<16x32xf32>
    %25 = vector.broadcast %1 : vector<1x32xf32> to vector<16x32xf32>
    %26 = arith.mulf %24, %25 : vector<16x32xf32>
    %27 = vector.broadcast %2 : vector<1x32xf32> to vector<16x32xf32>
    %28 = arith.addf %26, %27 : vector<16x32xf32>
    %29 = arith.truncf %28 : vector<16x32xf32> to vector<16x32xbf16>
    %30 = tpu.iota {dimensions = array<i32: 0>} : vector<16x16xi32>
    %31 = tpu.iota {dimensions = array<i32: 1>} : vector<16x16xi32>
    %c2_i32 = arith.constant 2 : i32
    %c0_i32 = arith.constant 0 : i32
    %32 = arith.cmpi eq, %c2_i32, %c0_i32 : i32
    %c1_i32 = arith.constant 1 : i32
    %33 = arith.select %32, %c1_i32, %c2_i32 : i32
    %34 = vector.broadcast %33 : i32 to vector<16x16xi32>
    %35 = arith.remsi %30, %34 : vector<16x16xi32>
    %c0_i32_12 = arith.constant 0 : i32
    %36 = vector.broadcast %c0_i32_12 : i32 to vector<16x16xi32>
    %37 = arith.cmpi ne, %35, %36 : vector<16x16xi32>
    %c0_i32_13 = arith.constant 0 : i32
    %38 = vector.broadcast %c0_i32_13 : i32 to vector<16x16xi32>
    %39 = arith.cmpi slt, %35, %38 : vector<16x16xi32>
    %c0_i32_14 = arith.constant 0 : i32
    %40 = arith.cmpi slt, %33, %c0_i32_14 : i32
    %41 = vector.broadcast %40 : i1 to vector<16x16xi1>
    %42 = vector.broadcast %41 : vector<16x16xi1> to vector<16x16xi1>
    %43 = arith.xori %39, %42 : vector<16x16xi1>
    %44 = arith.andi %43, %37 : vector<16x16xi1>
    %45 = vector.broadcast %33 : i32 to vector<16x16xi32>
    %46 = arith.addi %35, %45 : vector<16x16xi32>
    %47 = arith.select %44, %46, %35 : vector<16x16xi1>, vector<16x16xi32>
    %c2_i32_15 = arith.constant 2 : i32
    %c0_i32_16 = arith.constant 0 : i32
    %48 = arith.cmpi eq, %c2_i32_15, %c0_i32_16 : i32
    %c1_i32_17 = arith.constant 1 : i32
    %49 = arith.select %48, %c1_i32_17, %c2_i32_15 : i32
    %50 = vector.broadcast %49 : i32 to vector<16x16xi32>
    %51 = arith.remsi %31, %50 : vector<16x16xi32>
    %c0_i32_18 = arith.constant 0 : i32
    %52 = vector.broadcast %c0_i32_18 : i32 to vector<16x16xi32>
    %53 = arith.cmpi ne, %51, %52 : vector<16x16xi32>
    %c0_i32_19 = arith.constant 0 : i32
    %54 = vector.broadcast %c0_i32_19 : i32 to vector<16x16xi32>
    %55 = arith.cmpi slt, %51, %54 : vector<16x16xi32>
    %c0_i32_20 = arith.constant 0 : i32
    %56 = arith.cmpi slt, %49, %c0_i32_20 : i32
    %57 = vector.broadcast %56 : i1 to vector<16x16xi1>
    %58 = vector.broadcast %57 : vector<16x16xi1> to vector<16x16xi1>
    %59 = arith.xori %55, %58 : vector<16x16xi1>
    %60 = arith.andi %59, %53 : vector<16x16xi1>
    %61 = vector.broadcast %49 : i32 to vector<16x16xi32>
    %62 = arith.addi %51, %61 : vector<16x16xi32>
    %63 = arith.select %60, %62, %51 : vector<16x16xi1>, vector<16x16xi32>
    %64 = arith.cmpi eq, %47, %63 : vector<16x16xi32>
    %cst_21 = arith.constant 0.000000e+00 : f32
    %cst_22 = arith.constant -1.000000e+30 : f32
    %65 = vector.broadcast %cst_21 : f32 to vector<16x16xf32>
    %66 = vector.broadcast %cst_22 : f32 to vector<16x16xf32>
    %67 = arith.select %64, %65, %66 : vector<16x16xi1>, vector<16x16xf32>
    %c0_23 = arith.constant 0 : index
    %c0_24 = arith.constant 0 : index
    %68 = vector.load %arg3[%c0_23, %c0_24] : memref<32x96xbf16, #tpu.memory_space<vmem>>, vector<32x16xbf16>
    %cst_25 = arith.constant dense<0.000000e+00> : vector<16x16xf32>
    %69 = tpu.matmul %29, %68, %cst_25 {dimension_numbers = #tpu.dot_dimension_numbers<[1], [0], [0], [1], [0, 0, 1, 1], [], []>} : vector<16x32xbf16>, vector<32x16xbf16>, vector<16x16xf32> -> vector<16x16xf32>
    %c0_26 = arith.constant 0 : index
    %c0_27 = arith.constant 0 : index
    %70 = vector.load %arg4[%c0_26, %c0_27] : memref<1x96xf32, #tpu.memory_space<vmem>>, vector<1x16xf32>
    %71 = vector.broadcast %70 : vector<1x16xf32> to vector<16x16xf32>
    %72 = arith.addf %69, %71 : vector<16x16xf32>
    %c0_28 = arith.constant 0 : index
    %c32 = arith.constant 32 : index
    %73 = vector.load %arg3[%c0_28, %c32] : memref<32x96xbf16, #tpu.memory_space<vmem>>, vector<32x16xbf16>
    %cst_29 = arith.constant dense<0.000000e+00> : vector<16x16xf32>
    %74 = tpu.matmul %29, %73, %cst_29 {dimension_numbers = #tpu.dot_dimension_numbers<[1], [0], [0], [1], [0, 0, 1, 1], [], []>} : vector<16x32xbf16>, vector<32x16xbf16>, vector<16x16xf32> -> vector<16x16xf32>
    %c0_30 = arith.constant 0 : index
    %c32_31 = arith.constant 32 : index
    %75 = vector.load %arg4[%c0_30, %c32_31] : memref<1x96xf32, #tpu.memory_space<vmem>>, vector<1x16xf32>
    %76 = vector.broadcast %75 : vector<1x16xf32> to vector<16x16xf32>
    %77 = arith.addf %74, %76 : vector<16x16xf32>
    %c0_32 = arith.constant 0 : index
    %c64 = arith.constant 64 : index
    %78 = vector.load %arg3[%c0_32, %c64] : memref<32x96xbf16, #tpu.memory_space<vmem>>, vector<32x16xbf16>
    %cst_33 = arith.constant dense<0.000000e+00> : vector<16x16xf32>
    %79 = tpu.matmul %29, %78, %cst_33 {dimension_numbers = #tpu.dot_dimension_numbers<[1], [0], [0], [1], [0, 0, 1, 1], [], []>} : vector<16x32xbf16>, vector<32x16xbf16>, vector<16x16xf32> -> vector<16x16xf32>
    %c0_34 = arith.constant 0 : index
    %c64_35 = arith.constant 64 : index
    %80 = vector.load %arg4[%c0_34, %c64_35] : memref<1x96xf32, #tpu.memory_space<vmem>>, vector<1x16xf32>
    %81 = vector.broadcast %80 : vector<1x16xf32> to vector<16x16xf32>
    %82 = arith.addf %79, %81 : vector<16x16xf32>
    %83 = arith.truncf %72 : vector<16x16xf32> to vector<16x16xbf16>
    %84 = arith.truncf %77 : vector<16x16xf32> to vector<16x16xbf16>
    %cst_36 = arith.constant dense<0.000000e+00> : vector<16x16xf32>
    %85 = tpu.matmul %83, %84, %cst_36 {dimension_numbers = #tpu.dot_dimension_numbers<[1], [1], [0], [0], [0, 0, 1, 0], [], []>} : vector<16x16xbf16>, vector<16x16xbf16>, vector<16x16xf32> -> vector<16x16xf32>
    %86 = arith.addf %85, %67 : vector<16x16xf32>
    %cst_37 = arith.constant dense<0xFF800000> : vector<16xf32>
    %87 = vector.multi_reduction <maximumf>, %86, %cst_37 [1] : vector<16x16xf32> to vector<16xf32>
    %88 = vector.shape_cast %87 : vector<16xf32> to vector<16x1xf32>
    %89 = vector.broadcast %88 : vector<16x1xf32> to vector<16x16xf32>
    %90 = arith.subf %86, %89 : vector<16x16xf32>
    %91 = math.exp %90 : vector<16x16xf32>
    %cst_38 = arith.constant dense<0.000000e+00> : vector<16xf32>
    %92 = vector.multi_reduction <add>, %91, %cst_38 [1] : vector<16x16xf32> to vector<16xf32>
    %93 = vector.shape_cast %92 : vector<16xf32> to vector<16x1xf32>
    %94 = tpu.reciprocal %93 {approx = true} : vector<16x1xf32> -> vector<16x1xf32>
    %95 = vector.broadcast %94 : vector<16x1xf32> to vector<16x16xf32>
    %96 = arith.mulf %91, %95 : vector<16x16xf32>
    %97 = arith.truncf %96 : vector<16x16xf32> to vector<16x16xbf16>
    %98 = arith.truncf %82 : vector<16x16xf32> to vector<16x16xbf16>
    %cst_39 = arith.constant dense<0.000000e+00> : vector<16x16xf32>
    %99 = tpu.matmul %97, %98, %cst_39 {dimension_numbers = #tpu.dot_dimension_numbers<[1], [0], [0], [1], [0, 0, 1, 1], [], []>} : vector<16x16xbf16>, vector<16x16xbf16>, vector<16x16xf32> -> vector<16x16xf32>
    %100 = arith.truncf %99 : vector<16x16xf32> to vector<16x16xbf16>
    %c0_40 = arith.constant 0 : index
    %c0_41 = arith.constant 0 : index
    %101 = vector.load %arg5[%c0_40, %c0_41] : memref<32x32xbf16, #tpu.memory_space<vmem>>, vector<16x32xbf16>
    %cst_42 = arith.constant dense<0.000000e+00> : vector<16x32xf32>
    %102 = tpu.matmul %100, %101, %cst_42 {dimension_numbers = #tpu.dot_dimension_numbers<[1], [0], [0], [1], [0, 0, 1, 1], [], []>} : vector<16x16xbf16>, vector<16x32xbf16>, vector<16x32xf32> -> vector<16x32xf32>
    %c0_43 = arith.constant 0 : index
    %c16 = arith.constant 16 : index
    %103 = vector.load %arg3[%c0_43, %c16] : memref<32x96xbf16, #tpu.memory_space<vmem>>, vector<32x16xbf16>
    %cst_44 = arith.constant dense<0.000000e+00> : vector<16x16xf32>
    %104 = tpu.matmul %29, %103, %cst_44 {dimension_numbers = #tpu.dot_dimension_numbers<[1], [0], [0], [1], [0, 0, 1, 1], [], []>} : vector<16x32xbf16>, vector<32x16xbf16>, vector<16x16xf32> -> vector<16x16xf32>
    %c0_45 = arith.constant 0 : index
    %c16_46 = arith.constant 16 : index
    %105 = vector.load %arg4[%c0_45, %c16_46] : memref<1x96xf32, #tpu.memory_space<vmem>>, vector<1x16xf32>
    %106 = vector.broadcast %105 : vector<1x16xf32> to vector<16x16xf32>
    %107 = arith.addf %104, %106 : vector<16x16xf32>
    %c0_47 = arith.constant 0 : index
    %c48 = arith.constant 48 : index
    %108 = vector.load %arg3[%c0_47, %c48] : memref<32x96xbf16, #tpu.memory_space<vmem>>, vector<32x16xbf16>
    %cst_48 = arith.constant dense<0.000000e+00> : vector<16x16xf32>
    %109 = tpu.matmul %29, %108, %cst_48 {dimension_numbers = #tpu.dot_dimension_numbers<[1], [0], [0], [1], [0, 0, 1, 1], [], []>} : vector<16x32xbf16>, vector<32x16xbf16>, vector<16x16xf32> -> vector<16x16xf32>
    %c0_49 = arith.constant 0 : index
    %c48_50 = arith.constant 48 : index
    %110 = vector.load %arg4[%c0_49, %c48_50] : memref<1x96xf32, #tpu.memory_space<vmem>>, vector<1x16xf32>
    %111 = vector.broadcast %110 : vector<1x16xf32> to vector<16x16xf32>
    %112 = arith.addf %109, %111 : vector<16x16xf32>
    %c0_51 = arith.constant 0 : index
    %c80 = arith.constant 80 : index
    %113 = vector.load %arg3[%c0_51, %c80] : memref<32x96xbf16, #tpu.memory_space<vmem>>, vector<32x16xbf16>
    %cst_52 = arith.constant dense<0.000000e+00> : vector<16x16xf32>
    %114 = tpu.matmul %29, %113, %cst_52 {dimension_numbers = #tpu.dot_dimension_numbers<[1], [0], [0], [1], [0, 0, 1, 1], [], []>} : vector<16x32xbf16>, vector<32x16xbf16>, vector<16x16xf32> -> vector<16x16xf32>
    %c0_53 = arith.constant 0 : index
    %c80_54 = arith.constant 80 : index
    %115 = vector.load %arg4[%c0_53, %c80_54] : memref<1x96xf32, #tpu.memory_space<vmem>>, vector<1x16xf32>
    %116 = vector.broadcast %115 : vector<1x16xf32> to vector<16x16xf32>
    %117 = arith.addf %114, %116 : vector<16x16xf32>
    %118 = arith.truncf %107 : vector<16x16xf32> to vector<16x16xbf16>
    %119 = arith.truncf %112 : vector<16x16xf32> to vector<16x16xbf16>
    %cst_55 = arith.constant dense<0.000000e+00> : vector<16x16xf32>
    %120 = tpu.matmul %118, %119, %cst_55 {dimension_numbers = #tpu.dot_dimension_numbers<[1], [1], [0], [0], [0, 0, 1, 0], [], []>} : vector<16x16xbf16>, vector<16x16xbf16>, vector<16x16xf32> -> vector<16x16xf32>
    %121 = arith.addf %120, %67 : vector<16x16xf32>
    %cst_56 = arith.constant dense<0xFF800000> : vector<16xf32>
    %122 = vector.multi_reduction <maximumf>, %121, %cst_56 [1] : vector<16x16xf32> to vector<16xf32>
    %123 = vector.shape_cast %122 : vector<16xf32> to vector<16x1xf32>
    %124 = vector.broadcast %123 : vector<16x1xf32> to vector<16x16xf32>
    %125 = arith.subf %121, %124 : vector<16x16xf32>
    %126 = math.exp %125 : vector<16x16xf32>
    %cst_57 = arith.constant dense<0.000000e+00> : vector<16xf32>
    %127 = vector.multi_reduction <add>, %126, %cst_57 [1] : vector<16x16xf32> to vector<16xf32>
    %128 = vector.shape_cast %127 : vector<16xf32> to vector<16x1xf32>
    %129 = tpu.reciprocal %128 {approx = true} : vector<16x1xf32> -> vector<16x1xf32>
    %130 = vector.broadcast %129 : vector<16x1xf32> to vector<16x16xf32>
    %131 = arith.mulf %126, %130 : vector<16x16xf32>
    %132 = arith.truncf %131 : vector<16x16xf32> to vector<16x16xbf16>
    %133 = arith.truncf %117 : vector<16x16xf32> to vector<16x16xbf16>
    %cst_58 = arith.constant dense<0.000000e+00> : vector<16x16xf32>
    %134 = tpu.matmul %132, %133, %cst_58 {dimension_numbers = #tpu.dot_dimension_numbers<[1], [0], [0], [1], [0, 0, 1, 1], [], []>} : vector<16x16xbf16>, vector<16x16xbf16>, vector<16x16xf32> -> vector<16x16xf32>
    %135 = arith.truncf %134 : vector<16x16xf32> to vector<16x16xbf16>
    %c16_59 = arith.constant 16 : index
    %c0_60 = arith.constant 0 : index
    %136 = vector.load %arg5[%c16_59, %c0_60] : memref<32x32xbf16, #tpu.memory_space<vmem>>, vector<16x32xbf16>
    %cst_61 = arith.constant dense<0.000000e+00> : vector<16x32xf32>
    %137 = tpu.matmul %135, %136, %cst_61 {dimension_numbers = #tpu.dot_dimension_numbers<[1], [0], [0], [1], [0, 0, 1, 1], [], []>} : vector<16x16xbf16>, vector<16x32xbf16>, vector<16x32xf32> -> vector<16x32xf32>
    %138 = arith.addf %102, %137 : vector<16x32xf32>
    %139 = arith.addf %0, %138 : vector<16x32xf32>
    %140 = vector.broadcast %3 : vector<1x32xf32> to vector<16x32xf32>
    %141 = arith.addf %139, %140 : vector<16x32xf32>
    %cst_62 = arith.constant dense<0.000000e+00> : vector<16xf32>
    %142 = vector.multi_reduction <add>, %141, %cst_62 [1] : vector<16x32xf32> to vector<16xf32>
    %143 = vector.shape_cast %142 : vector<16xf32> to vector<16x1xf32>
    %cst_63 = arith.constant 3.200000e+01 : f32
    %144 = vector.broadcast %cst_63 : f32 to vector<16x1xf32>
    %145 = arith.divf %143, %144 : vector<16x1xf32>
    %146 = arith.mulf %141, %141 : vector<16x32xf32>
    %cst_64 = arith.constant dense<0.000000e+00> : vector<16xf32>
    %147 = vector.multi_reduction <add>, %146, %cst_64 [1] : vector<16x32xf32> to vector<16xf32>
    %148 = vector.shape_cast %147 : vector<16xf32> to vector<16x1xf32>
    %cst_65 = arith.constant 3.200000e+01 : f32
    %149 = vector.broadcast %cst_65 : f32 to vector<16x1xf32>
    %150 = arith.divf %148, %149 : vector<16x1xf32>
    %151 = arith.mulf %145, %145 : vector<16x1xf32>
    %152 = arith.subf %150, %151 : vector<16x1xf32>
    %153 = vector.broadcast %145 : vector<16x1xf32> to vector<16x32xf32>
    %154 = arith.subf %141, %153 : vector<16x32xf32>
    %cst_66 = arith.constant 9.99999974E-6 : f32
    %155 = vector.broadcast %cst_66 : f32 to vector<16x1xf32>
    %156 = arith.addf %152, %155 : vector<16x1xf32>
    %157 = math.rsqrt %156 : vector<16x1xf32>
    %158 = vector.broadcast %157 : vector<16x1xf32> to vector<16x32xf32>
    %159 = arith.mulf %154, %158 : vector<16x32xf32>
    %160 = vector.broadcast %4 : vector<1x32xf32> to vector<16x32xf32>
    %161 = arith.mulf %159, %160 : vector<16x32xf32>
    %162 = vector.broadcast %5 : vector<1x32xf32> to vector<16x32xf32>
    %163 = arith.addf %161, %162 : vector<16x32xf32>
    %164 = arith.truncf %163 : vector<16x32xf32> to vector<16x32xbf16>
    %c0_67 = arith.constant 0 : index
    %c0_68 = arith.constant 0 : index
    %165 = vector.load %arg6[%c0_67, %c0_68] : memref<32x128xbf16, #tpu.memory_space<vmem>>, vector<32x128xbf16>
    %cst_69 = arith.constant dense<0.000000e+00> : vector<16x128xf32>
    %166 = tpu.matmul %164, %165, %cst_69 {dimension_numbers = #tpu.dot_dimension_numbers<[1], [0], [0], [1], [0, 0, 1, 1], [], []>} : vector<16x32xbf16>, vector<32x128xbf16>, vector<16x128xf32> -> vector<16x128xf32>
    %c0_70 = arith.constant 0 : index
    %c0_71 = arith.constant 0 : index
    %167 = vector.load %arg7[%c0_70, %c0_71] : memref<1x128xf32, #tpu.memory_space<vmem>>, vector<1x128xf32>
    %168 = vector.broadcast %167 : vector<1x128xf32> to vector<16x128xf32>
    %169 = arith.addf %166, %168 : vector<16x128xf32>
    %cst_72 = arith.constant 0.000000e+00 : f32
    %170 = vector.broadcast %cst_72 : f32 to vector<16x128xf32>
    %171 = arith.maximumf %169, %170 : vector<16x128xf32>
    %172 = arith.truncf %171 : vector<16x128xf32> to vector<16x128xbf16>
    %c0_73 = arith.constant 0 : index
    %c0_74 = arith.constant 0 : index
    %173 = vector.load %arg8[%c0_73, %c0_74] : memref<128x32xbf16, #tpu.memory_space<vmem>>, vector<128x32xbf16>
    %cst_75 = arith.constant dense<0.000000e+00> : vector<16x32xf32>
    %174 = tpu.matmul %172, %173, %cst_75 {dimension_numbers = #tpu.dot_dimension_numbers<[1], [0], [0], [1], [0, 0, 1, 1], [], []>} : vector<16x128xbf16>, vector<128x32xbf16>, vector<16x32xf32> -> vector<16x32xf32>
    %175 = vector.broadcast %6 : vector<1x32xf32> to vector<16x32xf32>
    %176 = arith.addf %174, %175 : vector<16x32xf32>
    %177 = arith.addf %141, %176 : vector<16x32xf32>
    %c0_76 = arith.constant 0 : index
    %c0_77 = arith.constant 0 : index
    %178 = vector.load %arg9[%c0_76, %c0_77] : memref<16x32xf32, #tpu.memory_space<vmem>>, vector<16x32xf32>
    tpu.vector_store %arg9[%c0_76, %c0_77], %177 {strides = array<i32>} : memref<16x32xf32, #tpu.memory_space<vmem>>, vector<16x32xf32>,
    return
  }
  func.func @transform_0(%arg0: i32) -> (i32, i32) {
    %c0_i32 = arith.constant 0 : i32
    %c0_i32_0 = arith.constant 0 : i32
    %c0_i32_1 = arith.constant 0 : i32
    return %c0_i32, %c0_i32_0 : i32, i32
  }
  func.func @transform_1(%arg0: i32) -> (i32, i32) {
    %c0_i32 = arith.constant 0 : i32
    %c0_i32_0 = arith.constant 0 : i32
    %c0_i32_1 = arith.constant 0 : i32
    return %c0_i32, %c0_i32_0 : i32, i32
  }
  func.func @transform_2(%arg0: i32) -> (i32, i32) {
    %c0_i32 = arith.constant 0 : i32
    %c0_i32_0 = arith.constant 0 : i32
    %c0_i32_1 = arith.constant 0 : i32
    return %c0_i32, %c0_i32_0 : i32, i32
  }
  func.func @transform_3(%arg0: i32) -> (i32, i32) {
    %c0_i32 = arith.constant 0 : i32
    %c0_i32_0 = arith.constant 0 : i32
    %c0_i32_1 = arith.constant 0 : i32
    return %c0_i32, %c0_i32_0 : i32, i32
  }
  func.func @transform_4(%arg0: i32) -> (i32, i32) {
    %c0_i32 = arith.constant 0 : i32
    %c0_i32_0 = arith.constant 0 : i32
    %c0_i32_1 = arith.constant 0 : i32
    return %c0_i32, %c0_i32_0 : i32, i32
  }
  func.func @transform_5(%arg0: i32) -> (i32, i32) {
    %c0_i32 = arith.constant 0 : i32
    %c0_i32_0 = arith.constant 0 : i32
    %c0_i32_1 = arith.constant 0 : i32
    return %c0_i32, %c0_i32_0 : i32, i32
  }
  func.func @transform_6(%arg0: i32) -> (i32, i32) {
    %c0_i32 = arith.constant 0 : i32
    %c0_i32_0 = arith.constant 0 : i32
    %c0_i32_1 = arith.constant 0 : i32
    return %c0_i32, %c0_i32_0 : i32, i32
  }
  func.func @transform_7(%arg0: i32) -> (i32, i32) {
    %c0_i32 = arith.constant 0 : i32
    %c0_i32_0 = arith.constant 0 : i32
    %c0_i32_1 = arith.constant 0 : i32
    return %c0_i32, %c0_i32_0 : i32, i32
  }
  func.func @transform_8(%arg0: i32) -> (i32, i32) {
    %c0_i32 = arith.constant 0 : i32
    %c0_i32_0 = arith.constant 0 : i32
    %c0_i32_1 = arith.constant 0 : i32
    return %c0_i32, %c0_i32_0 : i32, i32
  }
}

</mosaic_0001>

<llo_original>
// kernel: transformer_block_forward.1
$region0: #{transformer_block_forward.1}
  #allocation0 [shape = 'u32[]', space=smem, size = 0x4, offset = 0x4, fixed_abs, tag = 'smem constant byte address 0x4 - core index']
  #allocation1 [shape = 'u32[144,128]{1,0:T(1,128)}', space=vmem, size = 0x12000, scoped, tag = 'internal scratch']
  %s0 = inlined_call_operand.vmem [shape: f32[16,32], index: 0, kind: input, shape index: {}]
  %s1 = inlined_call_operand.vmem [shape: f32[8,32], index: 1, kind: input, shape index: {}]
  %s2 = inlined_call_operand.vmem [shape: bf16[32,96], index: 2, kind: input, shape index: {}]
  %s3 = inlined_call_operand.vmem [shape: f32[1,96], index: 3, kind: input, shape index: {}]
  %s4 = inlined_call_operand.vmem [shape: bf16[32,32], index: 4, kind: input, shape index: {}]
  %s5 = inlined_call_operand.vmem [shape: bf16[32,128], index: 5, kind: input, shape index: {}]
  %s6 = inlined_call_operand.vmem [shape: f32[1,128], index: 6, kind: input, shape index: {}]
  %s7 = inlined_call_operand.vmem [shape: bf16[128,32], index: 7, kind: input, shape index: {}]
  %s8 = inlined_call_operand.hbm [shape: f32[16,32], index: 8, kind: output, shape index: {}]
  %s9 = sld [smem:[#allocation0]]
  $region42: #{transformer_block_forward.1} parent=0
    _
  %s11 = ssub.s32 1, %s9
  %s12 = scalar_select 0, %s11, %s9
  $region1: #{transformer_block_forward.1} parent=0
    #allocation2 [shape = 'u8[8192]{0}', space=vmem, size = 0x2000, scoped, tag = 'output window, operand 0, single buffered']
    #allocation3 [shape = 's32[1]{0}', space=sflag, size = 0x4, scoped, tag = 'scoped memory for transformer_block_forward.1']
    %13 = vsyncpa [#allocation3], 0
    // Predicated region
    $region2: #{transformer_block_forward.1} parent=1 // pred_check
      _
    $region3: #{transformer_block_forward.1} parent=1 // pred_check_branch
      %15 = sbr.rel (0) target = $region5
    $region4: #{transformer_block_forward.1} parent=1 // pred_region
      _
    $region5: #{transformer_block_forward.1} parent=1 // pred_fallthru
      _
    // Predicated region
    $region6: #{transformer_block_forward.1} parent=1 // pred_check
      _
    $region7: #{transformer_block_forward.1} parent=1 // pred_check_branch
      %17 = sbr.rel (0) target = $region9
    $region8: #{transformer_block_forward.1} parent=1 // pred_region
      _
    $region9: #{transformer_block_forward.1} parent=1 // pred_fallthru
      _
    // Predicated region
    $region10: #{transformer_block_forward.1} parent=1 // pred_check
      _
    $region11: #{transformer_block_forward.1} parent=1 // pred_check_branch
      %19 = sbr.rel (0) target = $region13
    $region12: #{transformer_block_forward.1} parent=1 // pred_region
      _
    $region13: #{transformer_block_forward.1} parent=1 // pred_fallthru
      _
    // Predicated region
    $region14: #{transformer_block_forward.1} parent=1 // pred_check
      _
    $region15: #{transformer_block_forward.1} parent=1 // pred_check_branch
      %21 = sbr.rel (0) target = $region17
    $region16: #{transformer_block_forward.1} parent=1 // pred_region
      _
    $region17: #{transformer_block_forward.1} parent=1 // pred_fallthru
      _
    // Predicated region
    $region18: #{transformer_block_forward.1} parent=1 // pred_check
      _
    $region19: #{transformer_block_forward.1} parent=1 // pred_check_branch
      %23 = sbr.rel (0) target = $region21
    $region20: #{transformer_block_forward.1} parent=1 // pred_region
      _
    $region21: #{transformer_block_forward.1} parent=1 // pred_fallthru
      _
    // Predicated region
    $region22: #{transformer_block_forward.1} parent=1 // pred_check
      _
    $region23: #{transformer_block_forward.1} parent=1 // pred_check_branch
      %25 = sbr.rel (0) target = $region25
    $region24: #{transformer_block_forward.1} parent=1 // pred_region
      _
    $region25: #{transformer_block_forward.1} parent=1 // pred_fallthru
      _
    // Predicated region
    $region26: #{transformer_block_forward.1} parent=1 // pred_check
      _
    $region27: #{transformer_block_forward.1} parent=1 // pred_check_branch
      %27 = sbr.rel (0) target = $region29
    $region28: #{transformer_block_forward.1} parent=1 // pred_region
      _
    $region29: #{transformer_block_forward.1} parent=1 // pred_fallthru
      _
    // Predicated region
    $region30: #{transformer_block_forward.1} parent=1 // pred_check
      _
    $region31: #{transformer_block_forward.1} parent=1 // pred_check_branch
      %29 = sbr.rel (0) target = $region33
    $region32: #{transformer_block_forward.1} parent=1 // pred_region
      _
    $region33: #{transformer_block_forward.1} parent=1 // pred_fallthru
      _
    %v31 = vld [vmem:[%s0] sm:$0xff]
    %v32 = vld [vmem:[%s0 + $0x8] sm:$0xff]
    %v33 = vld [vmem:[%s1] sm:$0x1]
    %v34 = vld [vmem:[%s1 + $0x1] sm:$0x1]
    %v35 = vld [vmem:[%s1 + $0x2] sm:$0x1]
    %v36 = vld [vmem:[%s1 + $0x3] sm:$0x1]
    %v37 = vld [vmem:[%s1 + $0x4] sm:$0x1]
    %v38 = vld [vmem:[%s1 + $0x5] sm:$0x1]
    %vm39 = vcmask 261120
    %v40 = vsel %vm39, %v31, 0.0
    %41 = vadd.xlane.f32.xlu0 %v40
    %v42 = vpop.xlane.xlu0 %41
    %v43 = vsel %vm39, %v32, 0.0
    %44 = vadd.xlane.f32.xlu0 %v43
    %v45 = vpop.xlane.xlu0 %44
    %v46 = vrcp.pop 32.0
    %v47 = vmul.f32 %v42, %v46
    %v48 = vmul.f32 %v45, %v46
    %v49 = vmul.f32 %v31, %v31
    %v50 = vmul.f32 %v32, %v32
    %v51 = vsel %vm39, %v49, 0.0
    %52 = vadd.xlane.f32.xlu0 %v51
    %v53 = vpop.xlane.xlu0 %52
    %v54 = vsel %vm39, %v50, 0.0
    %55 = vadd.xlane.f32.xlu0 %v54
    %v56 = vpop.xlane.xlu0 %55
    %v57 = vmul.f32 %v53, %v46
    %v58 = vmul.f32 %v56, %v46
    %v59 = vmul.f32 %v47, %v47
    %v60 = vmul.f32 %v48, %v48
    %v61 = vsub.f32 %v57, %v59
    %v62 = vsub.f32 %v58, %v60
    %v63 = vsub.f32 %v31, %v47
    %v64 = vsub.f32 %v32, %v48
    %v65 = vadd.f32 %v61, 1e-05
    %v66 = vadd.f32 %v62, 1e-05
    %v67 = vrsqrt.pop %v65
    %v68 = vrsqrt.pop %v66
    %v69 = vmul.f32 %v63, %v67
    %v70 = vmul.f32 %v64, %v68
    %v71 = vlaneseq
    %v72 = vshrl.u32 %v71, 7
    %v73 = vsub.s32 0, %v72
    %v74 = vrot.slane %v33, %v73
    %v75 = vmul.f32 %v69, %v74
    %v76 = vmul.f32 %v70, %v74
    %v77 = vlaneseq
    %v78 = vshrl.u32 %v77, 7
    %v79 = vsub.s32 0, %v78
    %v80 = vrot.slane %v34, %v79
    %v81 = vadd.f32 %v75, %v80
    %v82 = vadd.f32 %v76, %v80
    %v83 = vpack.c.bf16 %v82, %v81
    %v84 = vlaneseq
    %v85 = vshrl.u32 %v84, 7
    %v86 = vadd.s32 %v85, 8
    %v87 = vlaneseq
    %v88 = vand.u32 %v87, 127
    %vm89 = vcmp.lt.s32.totalorder %v85, 0
    %v90 = vsub.s32 0, %v85
    %v91 = vsel %vm89, %v90, %v85
    %v92 = vshrl.u32 %v91, 1
    %v93 = vand.u32 %v91, 1
    %v94 = vsub.s32 0, %v93
    %v95 = vsel %vm89, %v94, %v93
    %vm96 = vcmp.lt.s32.totalorder %v86, 0
    %v97 = vsub.s32 0, %v86
    %v98 = vsel %vm96, %v97, %v86
    %v99 = vshrl.u32 %v98, 1
    %v100 = vand.u32 %v98, 1
    %v101 = vsub.s32 0, %v100
    %v102 = vsel %vm96, %v101, %v100
    %vm103 = vcmp.ne.s32.totalorder %v95, 0
    %vm104 = vcmp.ne.s32.totalorder %v102, 0
    %vm105 = vcmp.lt.s32.totalorder %v95, 0
    %vm106 = vcmp.lt.s32.totalorder %v102, 0
    %vm107 = vmand %vm105, %vm103
    %vm108 = vmand %vm106, %vm104
    %v109 = vadd.s32 %v95, 2
    %v110 = vadd.s32 %v102, 2
    %v111 = vsel %vm107, %v109, %v95
    %v112 = vsel %vm108, %v110, %v102
    %vm113 = vcmp.lt.s32.totalorder %v88, 0
    %v114 = vsub.s32 0, %v88
    %v115 = vsel %vm113, %v114, %v88
    %v116 = vshrl.u32 %v115, 1
    %v117 = vand.u32 %v115, 1
    %v118 = vsub.s32 0, %v117
    %v119 = vsel %vm113, %v118, %v117
    %vm120 = vcmp.ne.s32.totalorder %v119, 0
    %vm121 = vcmp.lt.s32.totalorder %v119, 0
    %vm122 = vmand %vm121, %vm120
    %v123 = vadd.s32 %v119, 2
    %v124 = vsel %vm122, %v123, %v119
    %vm125 = vcmp.eq.s32.totalorder %v111, %v124
    %vm126 = vcmp.eq.s32.totalorder %v112, %v124
    %v127 = vsel %vm125, 0.0, -1e+30
    %v128 = vsel %vm126, 0.0, -1e+30
    %v129 = vld [vmem:[%s2] sm:$0xf]
    %v130 = vld [vmem:[%s2 + $0x4] sm:$0xf]
    %v131 = vld [vmem:[%s2 + $0x8] sm:$0xf]
    %v132 = vld [vmem:[%s2 + $0xc] sm:$0xf]
    %v133 = vld [vmem:[%s3] sm:$0x1]
    %v135 = vlaneseq
    %v136 = vshrl.u32 %v135, 7
    %v137 = vsub.s32 0, %v136
    %v138 = vrot.slane %v133, %v137
    %v144 = vunpack.c.l.b16 %v129
    %v145 = vunpack.c.l.b16 %v130
    %v146 = vunpack.c.l.b16 %v131
    %v147 = vunpack.c.l.b16 %v132
    %v148 = vpack.c.b16 %v145, %v144
    %v149 = vpack.c.b16 %v147, %v146
    %v153 = vsel %vm39, %v83, 0
    %155 = vmatprep.subr.bf16.mxu0 0
    %156 = vmatpush1.bf16.msra.mxu0 0
    %157 = vmatprep.subr.bf16.mxu0 0
    %158 = vmatpush1.bf16.msra.mxu0 0
    %159 = vmatprep.subr.bf16.mxu0 0
    %160 = vmatpush1.bf16.msra.mxu0 0
    %161 = vmatprep.subr.bf16.mxu0 0
    %162 = vmatpush1.bf16.msra.mxu0 0
    %163 = vmatprep.subr.bf16.mxu0 0
    %164 = vmatpush1.bf16.msra.mxu0 0
    %165 = vmatprep.subr.bf16.mxu0 0
    %166 = vmatpush1.bf16.msra.mxu0 0
    %167 = vmatprep.subr.bf16.mxu0 0
    %168 = vmatpush1.bf16.msra.mxu0 %v149
    %169 = vmatprep.subr.bf16.mxu0 0
    %170 = vmatpush1.bf16.msra.mxu0 %v148
    %171 = vmatprep.subr.bf16.mxu0 0
    %172 = vmatpush2.bf16.msra.mxu0 0
    %173 = vmatprep.subr.bf16.mxu0 0
    %174 = vmatpush2.bf16.msra.mxu0 0
    %175 = vmatprep.subr.bf16.mxu0 0
    %176 = vmatpush2.bf16.msra.mxu0 0
    %177 = vmatprep.subr.bf16.mxu0 0
    %178 = vmatpush2.bf16.msra.mxu0 0
    %179 = vmatprep.subr.bf16.mxu0 0
    %180 = vmatpush2.bf16.msra.mxu0 0
    %181 = vmatprep.subr.bf16.mxu0 0
    %182 = vmatpush2.bf16.msra.mxu0 0
    %183 = vmatprep.subr.bf16.mxu0 0
    %184 = vmatpush2.bf16.msra.mxu0 0
    %185 = vmatprep.subr.bf16.mxu0 0
    %186 = vmatpush2.bf16.msra.mxu0 0
    %187 = vmatprep.mubr.bf16.mxu0 0
    %188 = vmatmul.mubr.bf16.gmra.mxu0 %v153
    %v189 = vpop.f32.mrf.mxu0
    %v190 = vadd.f32 %v138, %v189
    %v191 = vpop.f32.mrf.mxu0
    %v192 = vpop.f32.mrf.mxu0
    %v193 = vadd.f32 %v138, %v192
    %v194 = vpop.f32.mrf.mxu0
    %195 = vdwg.mxu0
    %196 = vrot.lane.b32.xlu0 %v148, 96
    %v197 = vpop.permute.xlu0 %196
    %198 = vrot.lane.b32.xlu0 %v149, 96
    %v199 = vpop.permute.xlu0 %198
    %202 = vrot.lane.b32.xlu0 %v138, 96
    %v203 = vpop.permute.xlu0 %202
    %205 = vmatprep.subr.bf16.mxu0 0
    %206 = vmatpush1.bf16.msra.mxu0 0
    %207 = vmatprep.subr.bf16.mxu0 0
    %208 = vmatpush1.bf16.msra.mxu0 0
    %209 = vmatprep.subr.bf16.mxu0 0
    %210 = vmatpush1.bf16.msra.mxu0 0
    %211 = vmatprep.subr.bf16.mxu0 0
    %212 = vmatpush1.bf16.msra.mxu0 0
    %213 = vmatprep.subr.bf16.mxu0 0
    %214 = vmatpush1.bf16.msra.mxu0 0
    %215 = vmatprep.subr.bf16.mxu0 0
    %216 = vmatpush1.bf16.msra.mxu0 0
    %217 = vmatprep.subr.bf16.mxu0 0
    %218 = vmatpush1.bf16.msra.mxu0 %v199
    %219 = vmatprep.subr.bf16.mxu0 0
    %220 = vmatpush1.bf16.msra.mxu0 %v197
    %221 = vmatprep.subr.bf16.mxu0 0
    %222 = vmatpush2.bf16.msra.mxu0 0
    %223 = vmatprep.subr.bf16.mxu0 0
    %224 = vmatpush2.bf16.msra.mxu0 0
    %225 = vmatprep.subr.bf16.mxu0 0
    %226 = vmatpush2.bf16.msra.mxu0 0
    %227 = vmatprep.subr.bf16.mxu0 0
    %228 = vmatpush2.bf16.msra.mxu0 0
    %229 = vmatprep.subr.bf16.mxu0 0
    %230 = vmatpush2.bf16.msra.mxu0 0
    %231 = vmatprep.subr.bf16.mxu0 0
    %232 = vmatpush2.bf16.msra.mxu0 0
    %233 = vmatprep.subr.bf16.mxu0 0
    %234 = vmatpush2.bf16.msra.mxu0 0
    %235 = vmatprep.subr.bf16.mxu0 0
    %236 = vmatpush2.bf16.msra.mxu0 0
    %237 = vmatprep.mubr.bf16.mxu0 0
    %238 = vmatmul.mubr.bf16.gmra.mxu0 %v153
    %v239 = vpop.f32.mrf.mxu0
    %v240 = vadd.f32 %v203, %v239
    %v241 = vpop.f32.mrf.mxu0
    %v242 = vpop.f32.mrf.mxu0
    %v243 = vadd.f32 %v203, %v242
    %v244 = vpop.f32.mrf.mxu0
    %245 = vdwg.mxu0
    %246 = vrot.lane.b32.xlu0 %v148, 64
    %v247 = vpop.permute.xlu0 %246
    %248 = vrot.lane.b32.xlu0 %v149, 64
    %v249 = vpop.permute.xlu0 %248
    %252 = vrot.lane.b32.xlu0 %v138, 64
    %v253 = vpop.permute.xlu0 %252
    %255 = vmatprep.subr.bf16.mxu0 0
    %256 = vmatpush1.bf16.msra.mxu0 0
    %257 = vmatprep.subr.bf16.mxu0 0
    %258 = vmatpush1.bf16.msra.mxu0 0
    %259 = vmatprep.subr.bf16.mxu0 0
    %260 = vmatpush1.bf16.msra.mxu0 0
    %261 = vmatprep.subr.bf16.mxu0 0
    %262 = vmatpush1.bf16.msra.mxu0 0
    %263 = vmatprep.subr.bf16.mxu0 0
    %264 = vmatpush1.bf16.msra.mxu0 0
    %265 = vmatprep.subr.bf16.mxu0 0
    %266 = vmatpush1.bf16.msra.mxu0 0
    %267 = vmatprep.subr.bf16.mxu0 0
    %268 = vmatpush1.bf16.msra.mxu0 %v249
    %269 = vmatprep.subr.bf16.mxu0 0
    %270 = vmatpush1.bf16.msra.mxu0 %v247
    %271 = vmatprep.subr.bf16.mxu0 0
    %272 = vmatpush2.bf16.msra.mxu0 0
    %273 = vmatprep.subr.bf16.mxu0 0
    %274 = vmatpush2.bf16.msra.mxu0 0
    %275 = vmatprep.subr.bf16.mxu0 0
    %276 = vmatpush2.bf16.msra.mxu0 0
    %277 = vmatprep.subr.bf16.mxu0 0
    %278 = vmatpush2.bf16.msra.mxu0 0
    %279 = vmatprep.subr.bf16.mxu0 0
    %280 = vmatpush2.bf16.msra.mxu0 0
    %281 = vmatprep.subr.bf16.mxu0 0
    %282 = vmatpush2.bf16.msra.mxu0 0
    %283 = vmatprep.subr.bf16.mxu0 0
    %284 = vmatpush2.bf16.msra.mxu0 0
    %285 = vmatprep.subr.bf16.mxu0 0
    %286 = vmatpush2.bf16.msra.mxu0 0
    %287 = vmatprep.mubr.bf16.mxu0 0
    %288 = vmatmul.mubr.bf16.gmra.mxu0 %v153
    %v289 = vpop.f32.mrf.mxu0
    %v290 = vadd.f32 %v253, %v289
    %v291 = vpop.f32.mrf.mxu0
    %v292 = vpop.f32.mrf.mxu0
    %v293 = vadd.f32 %v253, %v292
    %v294 = vpop.f32.mrf.mxu0
    %295 = vdwg.mxu0
    %v296 = vpack.c.bf16 %v193, %v190
    %v297 = vpack.c.bf16 %v243, %v240
    %vm298 = vcmask 130048
    %v300 = vsel %vm298, %v296, 0
    %v303 = vsel %vm298, %v297, 0
    %305 = vmatprep.subr.bf16.mxu0 0
    %306 = vmatpush1.bf16.xpose.msra.mxu0 0
    %307 = vmatprep.subr.bf16.mxu0 0
    %308 = vmatpush1.bf16.xpose.msra.mxu0 0
    %309 = vmatprep.subr.bf16.mxu0 0
    %310 = vmatpush1.bf16.xpose.msra.mxu0 0
    %311 = vmatprep.subr.bf16.mxu0 0
    %312 = vmatpush1.bf16.xpose.msra.mxu0 0
    %313 = vmatprep.subr.bf16.mxu0 0
    %314 = vmatpush1.bf16.xpose.msra.mxu0 0
    %315 = vmatprep.subr.bf16.mxu0 0
    %316 = vmatpush1.bf16.xpose.msra.mxu0 0
    %317 = vmatprep.subr.bf16.mxu0 0
    %318 = vmatpush1.bf16.xpose.msra.mxu0 0
    %319 = vmatprep.subr.bf16.mxu0 0
    %320 = vmatpush1.bf16.xpose.msra.mxu0 %v303
    %321 = vmatprep.subr.bf16.mxu0 0
    %322 = vmatpush2.bf16.xpose.msra.mxu0 0
    %323 = vmatprep.subr.bf16.mxu0 0
    %324 = vmatpush2.bf16.xpose.msra.mxu0 0
    %325 = vmatprep.subr.bf16.mxu0 0
    %326 = vmatpush2.bf16.xpose.msra.mxu0 0
    %327 = vmatprep.subr.bf16.mxu0 0
    %328 = vmatpush2.bf16.xpose.msra.mxu0 0
    %329 = vmatprep.subr.bf16.mxu0 0
    %330 = vmatpush2.bf16.xpose.msra.mxu0 0
    %331 = vmatprep.subr.bf16.mxu0 0
    %332 = vmatpush2.bf16.xpose.msra.mxu0 0
    %333 = vmatprep.subr.bf16.mxu0 0
    %334 = vmatpush2.bf16.xpose.msra.mxu0 0
    %335 = vmatprep.subr.bf16.mxu0 0
    %336 = vmatpush2.bf16.xpose.msra.mxu0 0
    %337 = vmatprep.mubr.bf16.mxu0 0
    %338 = vmatmul.mubr.bf16.gmra.mxu0 %v300
    %v339 = vpop.f32.mrf.mxu0
    %v340 = vadd.f32 %v127, %v339
    %v341 = vpop.f32.mrf.mxu0
    %v342 = vpop.f32.mrf.mxu0
    %v343 = vadd.f32 %v128, %v342
    %v344 = vpop.f32.mrf.mxu0
    %345 = vdwg.mxu0
    %v346 = vsel %vm298, %v340, -inf
    %347 = vmax.xlane.f32.xlu0 %v346
    %v348 = vpop.xlane.xlu0 %347
    %v349 = vsel %vm298, %v343, -inf
    %350 = vmax.xlane.f32.xlu0 %v349
    %v351 = vpop.xlane.xlu0 %350
    %v352 = vsub.f32 %v340, %v348
    %v353 = vsub.f32 %v343, %v351
    %v354 = vmul.f32 %v352, 1.442695
    %v355 = vpow.pop %v354
    %v356 = vmul.f32 %v353, 1.442695
    %v357 = vpow.pop %v356
    %v358 = vsel %vm298, %v355, 0.0
    %359 = vadd.xlane.f32.xlu0 %v358
    %v360 = vpop.xlane.xlu0 %359
    %v361 = vsel %vm298, %v357, 0.0
    %362 = vadd.xlane.f32.xlu0 %v361
    %v363 = vpop.xlane.xlu0 %362
    %v364 = vrcp.pop %v360
    %v365 = vrcp.pop %v363
    %v366 = vmul.f32 %v355, %v364
    %v367 = vmul.f32 %v357, %v365
    %v368 = vpack.c.bf16 %v367, %v366
    %v369 = vpack.c.bf16 %v293, %v290
    %v371 = vsel %vm298, %v368, 0
    %373 = vmatprep.subr.bf16.mxu0 0
    %374 = vmatpush1.bf16.msra.mxu0 0
    %375 = vmatprep.subr.bf16.mxu0 0
    %376 = vmatpush1.bf16.msra.mxu0 0
    %377 = vmatprep.subr.bf16.mxu0 0
    %378 = vmatpush1.bf16.msra.mxu0 0
    %379 = vmatprep.subr.bf16.mxu0 0
    %380 = vmatpush1.bf16.msra.mxu0 0
    %381 = vmatprep.subr.bf16.mxu0 0
    %382 = vmatpush1.bf16.msra.mxu0 0
    %383 = vmatprep.subr.bf16.mxu0 0
    %384 = vmatpush1.bf16.msra.mxu0 0
    %385 = vmatprep.subr.bf16.mxu0 0
    %386 = vmatpush1.bf16.msra.mxu0 0
    %387 = vmatprep.subr.bf16.mxu0 0
    %388 = vmatpush1.bf16.msra.mxu0 %v369
    %389 = vmatprep.subr.bf16.mxu0 0
    %390 = vmatpush2.bf16.msra.mxu0 0
    %391 = vmatprep.subr.bf16.mxu0 0
    %392 = vmatpush2.bf16.msra.mxu0 0
    %393 = vmatprep.subr.bf16.mxu0 0
    %394 = vmatpush2.bf16.msra.mxu0 0
    %395 = vmatprep.subr.bf16.mxu0 0
    %396 = vmatpush2.bf16.msra.mxu0 0
    %397 = vmatprep.subr.bf16.mxu0 0
    %398 = vmatpush2.bf16.msra.mxu0 0
    %399 = vmatprep.subr.bf16.mxu0 0
    %400 = vmatpush2.bf16.msra.mxu0 0
    %401 = vmatprep.subr.bf16.mxu0 0
    %402 = vmatpush2.bf16.msra.mxu0 0
    %403 = vmatprep.subr.bf16.mxu0 0
    %404 = vmatpush2.bf16.msra.mxu0 0
    %405 = vmatprep.mubr.bf16.mxu0 0
    %406 = vmatmul.mubr.bf16.gmra.mxu0 %v371
    %v407 = vpop.f32.mrf.mxu0
    %v408 = vadd.f32 0.0, %v407
    %v409 = vpop.f32.mrf.mxu0
    %v410 = vpop.f32.mrf.mxu0
    %v411 = vadd.f32 0.0, %v410
    %v412 = vpop.f32.mrf.mxu0
    %413 = vdwg.mxu0
    %v414 = vpack.c.bf16 %v411, %v408
    %v415 = vld [vmem:[%s4] sm:$0xf]
    %v416 = vld [vmem:[%s4 + $0x4] sm:$0xf]
    %417 = vrot.lane.b32.xlu0 %v148, 112
    %v418 = vpop.permute.xlu0 %417
    %419 = vrot.lane.b32.xlu0 %v149, 112
    %v420 = vpop.permute.xlu0 %419
    %423 = vrot.lane.b32.xlu0 %v138, 112
    %v424 = vpop.permute.xlu0 %423
    %426 = vmatprep.subr.bf16.mxu0 0
    %427 = vmatpush1.bf16.msra.mxu0 0
    %428 = vmatprep.subr.bf16.mxu0 0
    %429 = vmatpush1.bf16.msra.mxu0 0
    %430 = vmatprep.subr.bf16.mxu0 0
    %431 = vmatpush1.bf16.msra.mxu0 0
    %432 = vmatprep.subr.bf16.mxu0 0
    %433 = vmatpush1.bf16.msra.mxu0 0
    %434 = vmatprep.subr.bf16.mxu0 0
    %435 = vmatpush1.bf16.msra.mxu0 0
    %436 = vmatprep.subr.bf16.mxu0 0
    %437 = vmatpush1.bf16.msra.mxu0 0
    %438 = vmatprep.subr.bf16.mxu0 0
    %439 = vmatpush1.bf16.msra.mxu0 %v420
    %440 = vmatprep.subr.bf16.mxu0 0
    %441 = vmatpush1.bf16.msra.mxu0 %v418
    %442 = vmatprep.subr.bf16.mxu0 0
    %443 = vmatpush2.bf16.msra.mxu0 0
    %444 = vmatprep.subr.bf16.mxu0 0
    %445 = vmatpush2.bf16.msra.mxu0 0
    %446 = vmatprep.subr.bf16.mxu0 0
    %447 = vmatpush2.bf16.msra.mxu0 0
    %448 = vmatprep.subr.bf16.mxu0 0
    %449 = vmatpush2.bf16.msra.mxu0 0
    %450 = vmatprep.subr.bf16.mxu0 0
    %451 = vmatpush2.bf16.msra.mxu0 0
    %452 = vmatprep.subr.bf16.mxu0 0
    %453 = vmatpush2.bf16.msra.mxu0 0
    %454 = vmatprep.subr.bf16.mxu0 0
    %455 = vmatpush2.bf16.msra.mxu0 0
    %456 = vmatprep.subr.bf16.mxu0 0
    %457 = vmatpush2.bf16.msra.mxu0 0
    %458 = vmatprep.mubr.bf16.mxu0 0
    %459 = vmatmul.mubr.bf16.gmra.mxu0 %v153
    %v460 = vpop.f32.mrf.mxu0
    %v461 = vadd.f32 %v424, %v460
    %v462 = vpop.f32.mrf.mxu0
    %v463 = vpop.f32.mrf.mxu0
    %v464 = vadd.f32 %v424, %v463
    %v465 = vpop.f32.mrf.mxu0
    %466 = vdwg.mxu0
    %467 = vrot.lane.b32.xlu0 %v148, 80
    %v468 = vpop.permute.xlu0 %467
    %469 = vrot.lane.b32.xlu0 %v149, 80
    %v470 = vpop.permute.xlu0 %469
    %473 = vrot.lane.b32.xlu0 %v138, 80
    %v474 = vpop.permute.xlu0 %473
    %476 = vmatprep.subr.bf16.mxu0 0
    %477 = vmatpush1.bf16.msra.mxu0 0
    %478 = vmatprep.subr.bf16.mxu0 0
    %479 = vmatpush1.bf16.msra.mxu0 0
    %480 = vmatprep.subr.bf16.mxu0 0
    %481 = vmatpush1.bf16.msra.mxu0 0
    %482 = vmatprep.subr.bf16.mxu0 0
    %483 = vmatpush1.bf16.msra.mxu0 0
    %484 = vmatprep.subr.bf16.mxu0 0
    %485 = vmatpush1.bf16.msra.mxu0 0
    %486 = vmatprep.subr.bf16.mxu0 0
    %487 = vmatpush1.bf16.msra.mxu0 0
    %488 = vmatprep.subr.bf16.mxu0 0
    %489 = vmatpush1.bf16.msra.mxu0 %v470
    %490 = vmatprep.subr.bf16.mxu0 0
    %491 = vmatpush1.bf16.msra.mxu0 %v468
    %492 = vmatprep.subr.bf16.mxu0 0
    %493 = vmatpush2.bf16.msra.mxu0 0
    %494 = vmatprep.subr.bf16.mxu0 0
    %495 = vmatpush2.bf16.msra.mxu0 0
    %496 = vmatprep.subr.bf16.mxu0 0
    %497 = vmatpush2.bf16.msra.mxu0 0
    %498 = vmatprep.subr.bf16.mxu0 0
    %499 = vmatpush2.bf16.msra.mxu0 0
    %500 = vmatprep.subr.bf16.mxu0 0
    %501 = vmatpush2.bf16.msra.mxu0 0
    %502 = vmatprep.subr.bf16.mxu0 0
    %503 = vmatpush2.bf16.msra.mxu0 0
    %504 = vmatprep.subr.bf16.mxu0 0
    %505 = vmatpush2.bf16.msra.mxu0 0
    %506 = vmatprep.subr.bf16.mxu0 0
    %507 = vmatpush2.bf16.msra.mxu0 0
    %508 = vmatprep.mubr.bf16.mxu0 0
    %509 = vmatmul.mubr.bf16.gmra.mxu0 %v153
    %v510 = vpop.f32.mrf.mxu0
    %v511 = vadd.f32 %v474, %v510
    %v512 = vpop.f32.mrf.mxu0
    %v513 = vpop.f32.mrf.mxu0
    %v514 = vadd.f32 %v474, %v513
    %v515 = vpop.f32.mrf.mxu0
    %516 = vdwg.mxu0
    %517 = vrot.lane.b32.xlu0 %v148, 48
    %v518 = vpop.permute.xlu0 %517
    %519 = vrot.lane.b32.xlu0 %v149, 48
    %v520 = vpop.permute.xlu0 %519
    %523 = vrot.lane.b32.xlu0 %v138, 48
    %v524 = vpop.permute.xlu0 %523
    %526 = vmatprep.subr.bf16.mxu0 0
    %527 = vmatpush1.bf16.msra.mxu0 0
    %528 = vmatprep.subr.bf16.mxu0 0
    %529 = vmatpush1.bf16.msra.mxu0 0
    %530 = vmatprep.subr.bf16.mxu0 0
    %531 = vmatpush1.bf16.msra.mxu0 0
    %532 = vmatprep.subr.bf16.mxu0 0
    %533 = vmatpush1.bf16.msra.mxu0 0
    %534 = vmatprep.subr.bf16.mxu0 0
    %535 = vmatpush1.bf16.msra.mxu0 0
    %536 = vmatprep.subr.bf16.mxu0 0
    %537 = vmatpush1.bf16.msra.mxu0 0
    %538 = vmatprep.subr.bf16.mxu0 0
    %539 = vmatpush1.bf16.msra.mxu0 %v520
    %540 = vmatprep.subr.bf16.mxu0 0
    %541 = vmatpush1.bf16.msra.mxu0 %v518
    %542 = vmatprep.subr.bf16.mxu0 0
    %543 = vmatpush2.bf16.msra.mxu0 0
    %544 = vmatprep.subr.bf16.mxu0 0
    %545 = vmatpush2.bf16.msra.mxu0 0
    %546 = vmatprep.subr.bf16.mxu0 0
    %547 = vmatpush2.bf16.msra.mxu0 0
    %548 = vmatprep.subr.bf16.mxu0 0
    %549 = vmatpush2.bf16.msra.mxu0 0
    %550 = vmatprep.subr.bf16.mxu0 0
    %551 = vmatpush2.bf16.msra.mxu0 0
    %552 = vmatprep.subr.bf16.mxu0 0
    %553 = vmatpush2.bf16.msra.mxu0 0
    %554 = vmatprep.subr.bf16.mxu0 0
    %555 = vmatpush2.bf16.msra.mxu0 0
    %556 = vmatprep.subr.bf16.mxu0 0
    %557 = vmatpush2.bf16.msra.mxu0 0
    %558 = vmatprep.mubr.bf16.mxu0 0
    %559 = vmatmul.mubr.bf16.gmra.mxu0 %v153
    %v560 = vpop.f32.mrf.mxu0
    %v561 = vadd.f32 %v524, %v560
    %v562 = vpop.f32.mrf.mxu0
    %v563 = vpop.f32.mrf.mxu0
    %v564 = vadd.f32 %v524, %v563
    %v565 = vpop.f32.mrf.mxu0
    %566 = vdwg.mxu0
    %v567 = vpack.c.bf16 %v464, %v461
    %v568 = vpack.c.bf16 %v514, %v511
    %v570 = vsel %vm298, %v567, 0
    %v573 = vsel %vm298, %v568, 0
    %575 = vmatprep.subr.bf16.mxu0 0
    %576 = vmatpush1.bf16.xpose.msra.mxu0 0
    %577 = vmatprep.subr.bf16.mxu0 0
    %578 = vmatpush1.bf16.xpose.msra.mxu0 0
    %579 = vmatprep.subr.bf16.mxu0 0
    %580 = vmatpush1.bf16.xpose.msra.mxu0 0
    %581 = vmatprep.subr.bf16.mxu0 0
    %582 = vmatpush1.bf16.xpose.msra.mxu0 0
    %583 = vmatprep.subr.bf16.mxu0 0
    %584 = vmatpush1.bf16.xpose.msra.mxu0 0
    %585 = vmatprep.subr.bf16.mxu0 0
    %586 = vmatpush1.bf16.xpose.msra.mxu0 0
    %587 = vmatprep.subr.bf16.mxu0 0
    %588 = vmatpush1.bf16.xpose.msra.mxu0 0
    %589 = vmatprep.subr.bf16.mxu0 0
    %590 = vmatpush1.bf16.xpose.msra.mxu0 %v573
    %591 = vmatprep.subr.bf16.mxu0 0
    %592 = vmatpush2.bf16.xpose.msra.mxu0 0
    %593 = vmatprep.subr.bf16.mxu0 0
    %594 = vmatpush2.bf16.xpose.msra.mxu0 0
    %595 = vmatprep.subr.bf16.mxu0 0
    %596 = vmatpush2.bf16.xpose.msra.mxu0 0
    %597 = vmatprep.subr.bf16.mxu0 0
    %598 = vmatpush2.bf16.xpose.msra.mxu0 0
    %599 = vmatprep.subr.bf16.mxu0 0
    %600 = vmatpush2.bf16.xpose.msra.mxu0 0
    %601 = vmatprep.subr.bf16.mxu0 0
    %602 = vmatpush2.bf16.xpose.msra.mxu0 0
    %603 = vmatprep.subr.bf16.mxu0 0
    %604 = vmatpush2.bf16.xpose.msra.mxu0 0
    %605 = vmatprep.subr.bf16.mxu0 0
    %606 = vmatpush2.bf16.xpose.msra.mxu0 0
    %607 = vmatprep.mubr.bf16.mxu0 0
    %608 = vmatmul.mubr.bf16.gmra.mxu0 %v570
    %v609 = vpop.f32.mrf.mxu0
    %v610 = vadd.f32 %v127, %v609
    %v611 = vpop.f32.mrf.mxu0
    %v612 = vpop.f32.mrf.mxu0
    %v613 = vadd.f32 %v128, %v612
    %v614 = vpop.f32.mrf.mxu0
    %615 = vdwg.mxu0
    %v616 = vsel %vm298, %v610, -inf
    %617 = vmax.xlane.f32.xlu0 %v616
    %v618 = vpop.xlane.xlu0 %617
    %v619 = vsel %vm298, %v613, -inf
    %620 = vmax.xlane.f32.xlu0 %v619
    %v621 = vpop.xlane.xlu0 %620
    %v622 = vsub.f32 %v610, %v618
    %v623 = vsub.f32 %v613, %v621
    %v624 = vmul.f32 %v622, 1.442695
    %v625 = vpow.pop %v624
    %v626 = vmul.f32 %v623, 1.442695
    %v627 = vpow.pop %v626
    %v628 = vsel %vm298, %v625, 0.0
    %629 = vadd.xlane.f32.xlu0 %v628
    %v630 = vpop.xlane.xlu0 %629
    %v631 = vsel %vm298, %v627, 0.0
    %632 = vadd.xlane.f32.xlu0 %v631
    %v633 = vpop.xlane.xlu0 %632
    %v634 = vrcp.pop %v630
    %v635 = vrcp.pop %v633
    %v636 = vmul.f32 %v625, %v634
    %v637 = vmul.f32 %v627, %v635
    %v638 = vpack.c.bf16 %v637, %v636
    %v639 = vpack.c.bf16 %v564, %v561
    %v641 = vsel %vm298, %v638, 0
    %643 = vmatprep.subr.bf16.mxu0 0
    %644 = vmatpush1.bf16.msra.mxu0 0
    %645 = vmatprep.subr.bf16.mxu0 0
    %646 = vmatpush1.bf16.msra.mxu0 0
    %647 = vmatprep.subr.bf16.mxu0 0
    %648 = vmatpush1.bf16.msra.mxu0 0
    %649 = vmatprep.subr.bf16.mxu0 0
    %650 = vmatpush1.bf16.msra.mxu0 0
    %651 = vmatprep.subr.bf16.mxu0 0
    %652 = vmatpush1.bf16.msra.mxu0 0
    %653 = vmatprep.subr.bf16.mxu0 0
    %654 = vmatpush1.bf16.msra.mxu0 0
    %655 = vmatprep.subr.bf16.mxu0 0
    %656 = vmatpush1.bf16.msra.mxu0 0
    %657 = vmatprep.subr.bf16.mxu0 0
    %658 = vmatpush1.bf16.msra.mxu0 %v639
    %659 = vmatprep.subr.bf16.mxu0 0
    %660 = vmatpush2.bf16.msra.mxu0 0
    %661 = vmatprep.subr.bf16.mxu0 0
    %662 = vmatpush2.bf16.msra.mxu0 0
    %663 = vmatprep.subr.bf16.mxu0 0
    %664 = vmatpush2.bf16.msra.mxu0 0
    %665 = vmatprep.subr.bf16.mxu0 0
    %666 = vmatpush2.bf16.msra.mxu0 0
    %667 = vmatprep.subr.bf16.mxu0 0
    %668 = vmatpush2.bf16.msra.mxu0 0
    %669 = vmatprep.subr.bf16.mxu0 0
    %670 = vmatpush2.bf16.msra.mxu0 0
    %671 = vmatprep.subr.bf16.mxu0 0
    %672 = vmatpush2.bf16.msra.mxu0 0
    %673 = vmatprep.subr.bf16.mxu0 0
    %674 = vmatpush2.bf16.msra.mxu0 0
    %675 = vmatprep.mubr.bf16.mxu0 0
    %676 = vmatmul.mubr.bf16.gmra.mxu0 %v641
    %v677 = vpop.f32.mrf.mxu0
    %v678 = vadd.f32 0.0, %v677
    %v679 = vpop.f32.mrf.mxu0
    %v680 = vpop.f32.mrf.mxu0
    %v681 = vadd.f32 0.0, %v680
    %v682 = vpop.f32.mrf.mxu0
    %683 = vdwg.mxu0
    %v684 = vpack.c.bf16 %v681, %v678
    %v685 = vld [vmem:[%s4 + $0x8] sm:$0xf]
    %v686 = vld [vmem:[%s4 + $0xc] sm:$0xf]
    %v689 = vunpack.c.l.b16 %v685
    %v690 = vunpack.c.l.b16 %v686
    %v691 = vpack.c.b16 %v690, %v689
    %v694 = vsel %vm298, %v684, 0
    %696 = vmatprep.subr.bf16.mxu0 0
    %697 = vmatpush1.bf16.msra.mxu0 0
    %698 = vmatprep.subr.bf16.mxu0 0
    %699 = vmatpush1.bf16.msra.mxu0 0
    %700 = vmatprep.subr.bf16.mxu0 0
    %701 = vmatpush1.bf16.msra.mxu0 0
    %702 = vmatprep.subr.bf16.mxu0 0
    %703 = vmatpush1.bf16.msra.mxu0 0
    %704 = vmatprep.subr.bf16.mxu0 0
    %705 = vmatpush1.bf16.msra.mxu0 0
    %706 = vmatprep.subr.bf16.mxu0 0
    %707 = vmatpush1.bf16.msra.mxu0 0
    %708 = vmatprep.subr.bf16.mxu0 0
    %709 = vmatpush1.bf16.msra.mxu0 0
    %710 = vmatprep.subr.bf16.mxu0 0
    %711 = vmatpush1.bf16.msra.mxu0 %v691
    %712 = vmatprep.subr.bf16.mxu0 0
    %713 = vmatpush2.bf16.msra.mxu0 0
    %714 = vmatprep.subr.bf16.mxu0 0
    %715 = vmatpush2.bf16.msra.mxu0 0
    %716 = vmatprep.subr.bf16.mxu0 0
    %717 = vmatpush2.bf16.msra.mxu0 0
    %718 = vmatprep.subr.bf16.mxu0 0
    %719 = vmatpush2.bf16.msra.mxu0 0
    %720 = vmatprep.subr.bf16.mxu0 0
    %721 = vmatpush2.bf16.msra.mxu0 0
    %722 = vmatprep.subr.bf16.mxu0 0
    %723 = vmatpush2.bf16.msra.mxu0 0
    %724 = vmatprep.subr.bf16.mxu0 0
    %725 = vmatpush2.bf16.msra.mxu0 0
    %726 = vmatprep.subr.bf16.mxu0 0
    %727 = vmatpush2.bf16.msra.mxu0 0
    %728 = vmatprep.mubr.bf16.mxu0 0
    %729 = vmatmul.mubr.bf16.gmra.mxu0 %v694
    %v730 = vpop.f32.mrf.mxu0
    %v731 = vadd.f32 0.0, %v730
    %v732 = vpop.f32.mrf.mxu0
    %v733 = vpop.f32.mrf.mxu0
    %v734 = vadd.f32 0.0, %v733
    %v735 = vpop.f32.mrf.mxu0
    %736 = vdwg.mxu0
    %v739 = vunpack.c.l.b16 %v415
    %v740 = vunpack.c.l.b16 %v416
    %v741 = vpack.c.b16 %v740, %v739
    %v744 = vsel %vm298, %v414, 0
    %746 = vmatprep.subr.bf16.mxu0 0
    %747 = vmatpush1.bf16.msra.mxu0 0
    %748 = vmatprep.subr.bf16.mxu0 0
    %749 = vmatpush1.bf16.msra.mxu0 0
    %750 = vmatprep.subr.bf16.mxu0 0
    %751 = vmatpush1.bf16.msra.mxu0 0
    %752 = vmatprep.subr.bf16.mxu0 0
    %753 = vmatpush1.bf16.msra.mxu0 0
    %754 = vmatprep.subr.bf16.mxu0 0
    %755 = vmatpush1.bf16.msra.mxu0 0
    %756 = vmatprep.subr.bf16.mxu0 0
    %757 = vmatpush1.bf16.msra.mxu0 0
    %758 = vmatprep.subr.bf16.mxu0 0
    %759 = vmatpush1.bf16.msra.mxu0 0
    %760 = vmatprep.subr.bf16.mxu0 0
    %761 = vmatpush1.bf16.msra.mxu0 %v741
    %762 = vmatprep.subr.bf16.mxu0 0
    %763 = vmatpush2.bf16.msra.mxu0 0
    %764 = vmatprep.subr.bf16.mxu0 0
    %765 = vmatpush2.bf16.msra.mxu0 0
    %766 = vmatprep.subr.bf16.mxu0 0
    %767 = vmatpush2.bf16.msra.mxu0 0
    %768 = vmatprep.subr.bf16.mxu0 0
    %769 = vmatpush2.bf16.msra.mxu0 0
    %770 = vmatprep.subr.bf16.mxu0 0
    %771 = vmatpush2.bf16.msra.mxu0 0
    %772 = vmatprep.subr.bf16.mxu0 0
    %773 = vmatpush2.bf16.msra.mxu0 0
    %774 = vmatprep.subr.bf16.mxu0 0
    %775 = vmatpush2.bf16.msra.mxu0 0
    %776 = vmatprep.subr.bf16.mxu0 0
    %777 = vmatpush2.bf16.msra.mxu0 0
    %778 = vmatprep.mubr.bf16.mxu0 0
    %779 = vmatmul.mubr.bf16.gmra.mxu0 %v744
    %v780 = vpop.f32.mrf.mxu0
    %v781 = vadd.f32 %v731, %v780
    %v782 = vpop.f32.mrf.mxu0
    %v783 = vpop.f32.mrf.mxu0
    %v784 = vadd.f32 %v734, %v783
    %v785 = vpop.f32.mrf.mxu0
    %786 = vdwg.mxu0
    %v787 = vadd.f32 %v31, %v781
    %v788 = vadd.f32 %v32, %v784
    %v789 = vlaneseq
    %v790 = vshrl.u32 %v789, 7
    %v791 = vsub.s32 0, %v790
    %v792 = vrot.slane %v35, %v791
    %v793 = vadd.f32 %v787, %v792
    %v794 = vadd.f32 %v788, %v792
    %v795 = vsel %vm39, %v793, 0.0
    %796 = vadd.xlane.f32.xlu0 %v795
    %v797 = vpop.xlane.xlu0 %796
    %v798 = vsel %vm39, %v794, 0.0
    %799 = vadd.xlane.f32.xlu0 %v798
    %v800 = vpop.xlane.xlu0 %799
    %v801 = vmul.f32 %v797, %v46
    %v802 = vmul.f32 %v800, %v46
    %v803 = vmul.f32 %v793, %v793
    %v804 = vmul.f32 %v794, %v794
    %v805 = vsel %vm39, %v803, 0.0
    %806 = vadd.xlane.f32.xlu0 %v805
    %v807 = vpop.xlane.xlu0 %806
    %v808 = vsel %vm39, %v804, 0.0
    %809 = vadd.xlane.f32.xlu0 %v808
    %v810 = vpop.xlane.xlu0 %809
    %v811 = vmul.f32 %v807, %v46
    %v812 = vmul.f32 %v810, %v46
    %v813 = vmul.f32 %v801, %v801
    %v814 = vmul.f32 %v802, %v802
    %v815 = vsub.f32 %v811, %v813
    %v816 = vsub.f32 %v812, %v814
    %v817 = vsub.f32 %v793, %v801
    %v818 = vsub.f32 %v794, %v802
    %v819 = vadd.f32 %v815, 1e-05
    %v820 = vadd.f32 %v816, 1e-05
    %v821 = vrsqrt.pop %v819
    %v822 = vrsqrt.pop %v820
    %v823 = vmul.f32 %v817, %v821
    %v824 = vmul.f32 %v818, %v822
    %v825 = vlaneseq
    %v826 = vshrl.u32 %v825, 7
    %v827 = vsub.s32 0, %v826
    %v828 = vrot.slane %v36, %v827
    %v829 = vmul.f32 %v823, %v828
    %v830 = vmul.f32 %v824, %v828
    %v831 = vlaneseq
    %v832 = vshrl.u32 %v831, 7
    %v833 = vsub.s32 0, %v832
    %v834 = vrot.slane %v37, %v833
    %v835 = vadd.f32 %v829, %v834
    %v836 = vadd.f32 %v830, %v834
    %v837 = vpack.c.bf16 %v836, %v835
    %v838 = vld [vmem:[%s5] sm:$0xf]
    %v839 = vld [vmem:[%s5 + $0x4] sm:$0xf]
    %v840 = vld [vmem:[%s5 + $0x8] sm:$0xf]
    %v841 = vld [vmem:[%s5 + $0xc] sm:$0xf]
    %v842 = vld [vmem:[%s6] sm:$0x1]
    %v844 = vlaneseq
    %v845 = vshrl.u32 %v844, 7
    %v846 = vsub.s32 0, %v845
    %v847 = vrot.slane %v842, %v846
    %v853 = vunpack.c.l.b16 %v838
    %v854 = vunpack.c.l.b16 %v839
    %v855 = vunpack.c.l.b16 %v840
    %v856 = vunpack.c.l.b16 %v841
    %v857 = vpack.c.b16 %v854, %v853
    %v858 = vpack.c.b16 %v856, %v855
    %v862 = vsel %vm39, %v837, 0
    %864 = vmatprep.subr.bf16.mxu0 0
    %865 = vmatpush1.bf16.msra.mxu0 0
    %866 = vmatprep.subr.bf16.mxu0 0
    %867 = vmatpush1.bf16.msra.mxu0 0
    %868 = vmatprep.subr.bf16.mxu0 0
    %869 = vmatpush1.bf16.msra.mxu0 0
    %870 = vmatprep.subr.bf16.mxu0 0
    %871 = vmatpush1.bf16.msra.mxu0 0
    %872 = vmatprep.subr.bf16.mxu0 0
    %873 = vmatpush1.bf16.msra.mxu0 0
    %874 = vmatprep.subr.bf16.mxu0 0
    %875 = vmatpush1.bf16.msra.mxu0 0
    %876 = vmatprep.subr.bf16.mxu0 0
    %877 = vmatpush1.bf16.msra.mxu0 %v858
    %878 = vmatprep.subr.bf16.mxu0 0
    %879 = vmatpush1.bf16.msra.mxu0 %v857
    %880 = vmatprep.subr.bf16.mxu0 0
    %881 = vmatpush2.bf16.msra.mxu0 0
    %882 = vmatprep.subr.bf16.mxu0 0
    %883 = vmatpush2.bf16.msra.mxu0 0
    %884 = vmatprep.subr.bf16.mxu0 0
    %885 = vmatpush2.bf16.msra.mxu0 0
    %886 = vmatprep.subr.bf16.mxu0 0
    %887 = vmatpush2.bf16.msra.mxu0 0
    %888 = vmatprep.subr.bf16.mxu0 0
    %889 = vmatpush2.bf16.msra.mxu0 0
    %890 = vmatprep.subr.bf16.mxu0 0
    %891 = vmatpush2.bf16.msra.mxu0 0
    %892 = vmatprep.subr.bf16.mxu0 0
    %893 = vmatpush2.bf16.msra.mxu0 0
    %894 = vmatprep.subr.bf16.mxu0 0
    %895 = vmatpush2.bf16.msra.mxu0 0
    %896 = vmatprep.mubr.bf16.mxu0 0
    %897 = vmatmul.mubr.bf16.gmra.mxu0 %v862
    %v898 = vpop.f32.mrf.mxu0
    %v899 = vadd.f32 %v847, %v898
    %v900 = vpop.f32.mrf.mxu0
    %v901 = vpop.f32.mrf.mxu0
    %v902 = vadd.f32 %v847, %v901
    %v903 = vpop.f32.mrf.mxu0
    %904 = vdwg.mxu0
    %v905 = vmax.f32 %v899, 0.0
    %v906 = vmax.f32 %v902, 0.0
    %v907 = vpack.c.bf16 %v906, %v905
    %v908 = vld [vmem:[%s7] sm:$0xf]
    %v909 = vld [vmem:[%s7 + $0x4] sm:$0xf]
    %v910 = vld [vmem:[%s7 + $0x8] sm:$0xf]
    %v911 = vld [vmem:[%s7 + $0xc] sm:$0xf]
    %v912 = vld [vmem:[%s7 + $0x10] sm:$0xf]
    %v913 = vld [vmem:[%s7 + $0x14] sm:$0xf]
    %v914 = vld [vmem:[%s7 + $0x18] sm:$0xf]
    %v915 = vld [vmem:[%s7 + $0x1c] sm:$0xf]
    %v916 = vld [vmem:[%s7 + $0x20] sm:$0xf]
    %v917 = vld [vmem:[%s7 + $0x24] sm:$0xf]
    %v918 = vld [vmem:[%s7 + $0x28] sm:$0xf]
    %v919 = vld [vmem:[%s7 + $0x2c] sm:$0xf]
    %v920 = vld [vmem:[%s7 + $0x30] sm:$0xf]
    %v921 = vld [vmem:[%s7 + $0x34] sm:$0xf]
    %v922 = vld [vmem:[%s7 + $0x38] sm:$0xf]
    %v923 = vld [vmem:[%s7 + $0x3c] sm:$0xf]
    %v924 = vlaneseq
    %v925 = vshrl.u32 %v924, 7
    %v926 = vsub.s32 0, %v925
    %v927 = vrot.slane %v38, %v926
    %v944 = vunpack.c.l.b16 %v908
    %v945 = vunpack.c.l.b16 %v909
    %v946 = vunpack.c.l.b16 %v910
    %v947 = vunpack.c.l.b16 %v911
    %v948 = vunpack.c.l.b16 %v912
    %v949 = vunpack.c.l.b16 %v913
    %v950 = vunpack.c.l.b16 %v914
    %v951 = vunpack.c.l.b16 %v915
    %v952 = vunpack.c.l.b16 %v916
    %v953 = vunpack.c.l.b16 %v917
    %v954 = vunpack.c.l.b16 %v918
    %v955 = vunpack.c.l.b16 %v919
    %v956 = vunpack.c.l.b16 %v920
    %v957 = vunpack.c.l.b16 %v921
    %v958 = vunpack.c.l.b16 %v922
    %v959 = vunpack.c.l.b16 %v923
    %v960 = vpack.c.b16 %v945, %v944
    %v961 = vpack.c.b16 %v947, %v946
    %v962 = vpack.c.b16 %v949, %v948
    %v963 = vpack.c.b16 %v951, %v950
    %v964 = vpack.c.b16 %v953, %v952
    %v965 = vpack.c.b16 %v955, %v954
    %v966 = vpack.c.b16 %v957, %v956
    %v967 = vpack.c.b16 %v959, %v958
    %976 = vmatprep.subr.bf16.mxu0 0
    %977 = vmatpush1.bf16.msra.mxu0 %v967
    %978 = vmatprep.subr.bf16.mxu0 0
    %979 = vmatpush1.bf16.msra.mxu0 %v966
    %980 = vmatprep.subr.bf16.mxu0 0
    %981 = vmatpush1.bf16.msra.mxu0 %v965
    %982 = vmatprep.subr.bf16.mxu0 0
    %983 = vmatpush1.bf16.msra.mxu0 %v964
    %984 = vmatprep.subr.bf16.mxu0 0
    %985 = vmatpush1.bf16.msra.mxu0 %v963
    %986 = vmatprep.subr.bf16.mxu0 0
    %987 = vmatpush1.bf16.msra.mxu0 %v962
    %988 = vmatprep.subr.bf16.mxu0 0
    %989 = vmatpush1.bf16.msra.mxu0 %v961
    %990 = vmatprep.subr.bf16.mxu0 0
    %991 = vmatpush1.bf16.msra.mxu0 %v960
    %992 = vmatprep.subr.bf16.mxu0 0
    %993 = vmatpush2.bf16.msra.mxu0 0
    %994 = vmatprep.subr.bf16.mxu0 0
    %995 = vmatpush2.bf16.msra.mxu0 0
    %996 = vmatprep.subr.bf16.mxu0 0
    %997 = vmatpush2.bf16.msra.mxu0 0
    %998 = vmatprep.subr.bf16.mxu0 0
    %999 = vmatpush2.bf16.msra.mxu0 0
    %1000 = vmatprep.subr.bf16.mxu0 0
    %1001 = vmatpush2.bf16.msra.mxu0 0
    %1002 = vmatprep.subr.bf16.mxu0 0
    %1003 = vmatpush2.bf16.msra.mxu0 0
    %1004 = vmatprep.subr.bf16.mxu0 0
    %1005 = vmatpush2.bf16.msra.mxu0 0
    %1006 = vmatprep.subr.bf16.mxu0 0
    %1007 = vmatpush2.bf16.msra.mxu0 0
    %1008 = vmatprep.mubr.bf16.mxu0 0
    %1009 = vmatmul.mubr.bf16.gmra.mxu0 %v907
    %v1010 = vpop.f32.mrf.mxu0
    %v1011 = vadd.f32 %v927, %v1010
    %v1012 = vpop.f32.mrf.mxu0
    %v1013 = vpop.f32.mrf.mxu0
    %v1014 = vadd.f32 %v927, %v1013
    %v1015 = vpop.f32.mrf.mxu0
    %1016 = vdwg.mxu0
    %v1017 = vadd.f32 %v793, %v1011
    %v1018 = vadd.f32 %v794, %v1014
    %1019 = vst.msk [vmem:[#allocation2] sm:$0xff] %vm39, %v1017
    %1020 = vst.msk [vmem:[#allocation2 + $0x8] sm:$0xff] %vm39, %v1018
    // Predicated region
    $region34: #{transformer_block_forward.1} parent=1 // pred_check
      _
    $region35: #{transformer_block_forward.1} parent=1 // pred_check_branch
      %1022 = sbr.rel (0) target = $region37
    $region36: #{transformer_block_forward.1} parent=1 // pred_region
      %s1024 = ssub.s32 256, 256
      %1025 = vsyncadd [#allocation3], %s1024
      %s1026 = sshll.u32 [#allocation2], 4
      %s1027 = int_to_ptr.vmem [resolvable:$true] %s1026
      %1032 = dma.vmem_to_hbm [thread:$0]  %s1027, 256, %s8, [#allocation3], 128, 128, 8
    $region37: #{transformer_block_forward.1} parent=1 // pred_fallthru
      _
    // Predicated region
    $region38: #{transformer_block_forward.1} parent=1 // pred_check
      _
    $region39: #{transformer_block_forward.1} parent=1 // pred_check_branch
      %1034 = sbr.rel (0) target = $region41
    $region40: #{transformer_block_forward.1} parent=1 // pred_region
      %1035 = dma.done [#allocation3], 256
    $region41: #{transformer_block_forward.1} parent=1 // pred_fallthru
      _
    %1036 = vsyncpa [#allocation3], 1

</llo_original>
